<compile_context>
chip_gen: v7x
topology: tpu7x:2x2x1
jax: 0.10.0
libtpu: 0.0.40
codegen_flags: <defaults>
</compile_context>

<pallas_src>
import numpy as np
import jax
import jax.numpy as jnp
from jax.experimental import pallas as pl
from jax.experimental.pallas import tpu as pltpu

EPS = 1e-5  # torch.nn.LayerNorm default


def _round_up(x, m):
    return (x + m - 1) // m * m


def _choose_sample_tile(N, max_b=8):
    # >=2 grid steps whenever N >= 2 (dual-TC v7x); otherwise as few steps as possible so the
    # fixed per-grid-step overhead is shared by B samples.
    steps = max(1 if N <= 1 else 2, -(-N // max_b))
    return -(-N // steps)


def _make_boundary_masks(H, W):
    # (9, H*W) f32 0/1: mask[t, p] == 1 iff tap t of pixel p stays inside the image.
    P = H * W
    p = np.arange(P)
    hh, ww = p // W, p % W
    masks = np.zeros((9, P), np.float32)
    t = 0
    for dh in (-1, 0, 1):
        for dw in (-1, 0, 1):
            m = (hh + dh >= 0) & (hh + dh < H) & (ww + dw >= 0) & (ww + dw < W)
            masks[t] = m.astype(np.float32)
            t += 1
    return jnp.asarray(masks)


def _make_fused_kernel(H, W, B, Cout):
    P = H * W
    shifts = [dh * W + dw for dh in (-1, 0, 1) for dw in (-1, 0, 1)]

    def kernel(masks_ref, x_ref, w1s_ref, b1s_ref, g1_ref, be1_ref,
               w2_ref, b2_ref, g2_ref, be2_ref, gs_ref, bes_ref, o_ref):
        # masks_ref: (9, P) f32            x_ref : (B, Cin_p, P) f32
        # w1s_ref  : (2*Cout, 9*Cin_p) bf16 (conv1 rows, then 1x1-shortcut rows in center-tap cols)
        # b1s_ref  : (2*Cout, 1) f32       w2_ref: (Cout, 9*Cout) bf16    b2_ref: (Cout, 1) f32
        # g*/be*   : (Cout, P) f32         o_ref : (B, Cout, P) f32
        masks = masks_ref[...]
        w1s, b1s = w1s_ref[...], b1s_ref[...]
        w2, b2 = w2_ref[...], b2_ref[...]
        g1, be1 = g1_ref[...], be1_ref[...]
        g2, be2 = g2_ref[...], be2_ref[...]
        gs, bes = gs_ref[...], bes_ref[...]

        def im2col(a):
            # a: (C, P) f32 -> (9*C, P) bf16, tap-major rows (row = tap*C + channel).
            pieces = []
            for t in range(9):
                s = shifts[t]
                if s == 0:
                    pieces.append(a)                              # center tap: mask all-true
                else:
                    rolled = pltpu.roll(a, shift=(-s) % P, axis=1)
                    pieces.append(rolled * masks[t:t + 1, :])     # zero out-of-image taps
            return jnp.concatenate(pieces, axis=0).astype(jnp.bfloat16)

        def layernorm(y, g, b):
            # torch LayerNorm([C,H,W]): per-sample, biased variance; single-pass sum/sumsq in f32.
            inv_n = 1.0 / (y.shape[0] * y.shape[1])
            mean = jnp.sum(y, axis=(0, 1), keepdims=True) * inv_n
            msq = jnp.sum(y * y, axis=(0, 1), keepdims=True) * inv_n
            var = jnp.maximum(msq - mean * mean, 0.0)
            return (y - mean) * jax.lax.rsqrt(var + EPS) * g + b

        for b in range(B):  # static unroll: B samples share one grid step's fixed overhead
            x = x_ref[b]                                          # (Cin_p, P) f32
            # conv1 (3x3) and the 1x1 shortcut fused into ONE deep-K MXU matmul.
            y01 = jnp.dot(w1s, im2col(x), preferred_element_type=jnp.float32) + b1s
            sc = layernorm(y01[Cout:], gs, bes)                   # shortcut: 1x1 conv + LN
            y = jnp.maximum(layernorm(y01[:Cout], g1, be1), 0.0)  # conv1 + LN + ReLU
            y = jnp.dot(w2, im2col(y), preferred_element_type=jnp.float32) + b2
            y = jnp.maximum(layernorm(y, g2, be2), 0.0)           # conv2 + LN + ReLU
            o_ref[b] = y + sc                                     # fused residual add

    return kernel


def _fused_forward(x_pad_flat, masks, params, H, W, B):
    # x_pad_flat: (Npad, Cin_p, P) f32; one grid step per B samples.
    (w1s, b1s, g1, be1, w2, b2, g2, be2, gs, bes) = params
    Npad, Cin_p, P = x_pad_flat.shape
    Cout = g1.shape[0]

    def fixed(arr):  # whole array resident in VMEM, fetched once (constant block index)
        nd = arr.ndim
        return pl.BlockSpec(arr.shape, lambda n, _nd=nd: (0,) * _nd)

    return pl.pallas_call(
        _make_fused_kernel(H, W, B, Cout),
        out_shape=jax.ShapeDtypeStruct((Npad, Cout, P), jnp.float32),
        grid_spec=pltpu.PrefetchScalarGridSpec(
            num_scalar_prefetch=0,
            grid=(Npad // B,),
            in_specs=[
                fixed(masks),
                pl.BlockSpec((B, Cin_p, P), lambda n: (n, 0, 0)),   # B samples per step
                fixed(w1s), fixed(b1s), fixed(g1), fixed(be1),
                fixed(w2), fixed(b2), fixed(g2), fixed(be2),
                fixed(gs), fixed(bes),
            ],
            out_specs=pl.BlockSpec((B, Cout, P), lambda n: (n, 0, 0)),
        ),
        compiler_params=pltpu.CompilerParams(dimension_semantics=("parallel",)),
    )(masks, x_pad_flat, w1s, b1s, g1, be1, w2, b2, g2, be2, gs, bes)


class ResConvBlockPallas:
    """Pallas/TPU implementation of the PyTorch ResConvBlock forward pass."""

    def __init__(self, key, in_channels, out_channels, shape=(16, 16), dropout_rate=0.0):
        H, W = shape
        self.H, self.W = H, W
        self.Cin, self.Cout = in_channels, out_channels
        self.Cin_p = _round_up(in_channels, 8)  # pad input channels to sublane multiple
        assert dropout_rate == 0.0
        # TODO(synk): dropout_rate > 0 not implemented; module default (0.0) is identity.
        ks = jax.random.split(key, 6)

        def conv_init(k, o, i, kh, kw):  # torch Conv2d default (kaiming-uniform-ish) init
            fan_in = i * kh * kw
            bound = 1.0 / np.sqrt(fan_in)
            kw_, kb_ = jax.random.split(k)
            w = jax.random.uniform(kw_, (o, i, kh, kw), jnp.float32, -bound, bound)
            b = jax.random.uniform(kb_, (o,), jnp.float32, -bound, bound)
            return w, b

        w1, b1 = conv_init(ks[0], out_channels, in_channels, 3, 3)
        w2, b2 = conv_init(ks[1], out_channels, out_channels, 3, 3)
        ws, bs = conv_init(ks[2], out_channels, in_channels, 1, 1)

        def ln_init(k):  # LayerNorm affine params, torch layout (C, H, W); perturbed from (1, 0)
            kg, kb = jax.random.split(k)
            g = 1.0 + 0.1 * jax.random.normal(kg, (out_channels, H, W), jnp.float32)
            b = 0.1 * jax.random.normal(kb, (out_channels, H, W), jnp.float32)
            return g, b

        self.g1, self.be1 = ln_init(ks[3])
        self.g2, self.be2 = ln_init(ks[4])
        self.gs, self.bes = ln_init(ks[5])
        self.w1, self.w2, self.ws = w1, w2, ws          # f32 originals, for the JAX reference
        self.b1, self.b2, self.bs = b1, b2, bs

        def conv3x3_cols(w, cin, cin_p):
            # torch (O, I, 3, 3) -> (O, 9*cin_p) with column index (kh*3+kw)*cin_p + i
            wt = jnp.transpose(w, (0, 2, 3, 1))                               # (O, kh, kw, I)
            wt = jnp.pad(wt, ((0, 0), (0, 0), (0, 0), (0, cin_p - cin)))
            return wt.reshape(w.shape[0], 9 * cin_p)

        # Stack the 1x1 shortcut weights under conv1 (center-tap columns only) -> single matmul.
        w1_cols = conv3x3_cols(w1, in_channels, self.Cin_p)                   # (Cout, 9*Cin_p)
        ws_cols = jnp.zeros((out_channels, 9 * self.Cin_p), jnp.float32)
        ws_cols = ws_cols.at[:, 4 * self.Cin_p:4 * self.Cin_p + in_channels].set(ws[:, :, 0, 0])
        self.w1s_flat = jnp.concatenate([w1_cols, ws_cols], axis=0).astype(jnp.bfloat16)
        self.b1s_c = jnp.concatenate([b1, bs], axis=0).reshape(2 * out_channels, 1)   # f32
        self.w2_flat = conv3x3_cols(w2, out_channels, out_channels).astype(jnp.bfloat16)
        self.b2_c = b2.reshape(out_channels, 1)

        P = H * W
        self.g1_f, self.be1_f = self.g1.reshape(out_channels, P), self.be1.reshape(out_channels, P)
        self.g2_f, self.be2_f = self.g2.reshape(out_channels, P), self.be2.reshape(out_channels, P)
        self.gs_f, self.bes_f = self.gs.reshape(out_channels, P), self.bes.reshape(out_channels, P)

        self.masks = _make_boundary_masks(H, W)                               # (9, P) f32

        self._jit_forward = jax.jit(self._forward)

    def _forward(self, x_nchw):
        N, Cin, H, W = x_nchw.shape
        P = H * W
        x_flat = x_nchw.reshape(N, Cin, P)                        # NCHW is already (C, P) layout
        if self.Cin_p != Cin:
            x_flat = jnp.pad(x_flat, ((0, 0), (0, self.Cin_p - Cin), (0, 0)))
        B = _choose_sample_tile(N)
        Npad = -(-N // B) * B
        if Npad != N:
            x_flat = jnp.pad(x_flat, ((0, Npad - N), (0, 0), (0, 0)))
        params = (self.w1s_flat, self.b1s_c, self.g1_f, self.be1_f,
                  self.w2_flat, self.b2_c, self.g2_f, self.be2_f,
                  self.gs_f, self.bes_f)
        out = _fused_forward(x_flat, self.masks, params, H, W, B)  # (Npad, Cout, P)
        if Npad != N:
            out = out[:N]
        return out.reshape(N, self.Cout, H, W)                    # dropout_rate == 0 -> identity

    def __call__(self, x_nchw):
        return self._jit_forward(x_nchw)


def _reference_forward(m, x_nchw):
    # Pure-JAX/XLA reference of the PyTorch forward, for validation only (high precision).
    def conv(x, w, b, pad):
        y = jax.lax.conv_general_dilated(
            x, w, window_strides=(1, 1), padding=[(pad, pad), (pad, pad)],
            dimension_numbers=("NCHW", "OIHW", "NCHW"),
            precision=jax.lax.Precision.HIGHEST)
        return y + b[None, :, None, None]

    def ln(x, g, b):
        mean = jnp.mean(x, axis=(1, 2, 3), keepdims=True)
        var = jnp.mean((x - mean) ** 2, axis=(1, 2, 3), keepdims=True)
        return (x - mean) * jax.lax.rsqrt(var + EPS) * g[None] + b[None]

    sc = ln(conv(x_nchw, m.ws, m.bs, 0), m.gs, m.bes)
    h = jnp.maximum(ln(conv(x_nchw, m.w1, m.b1, 1), m.g1, m.be1), 0.0)
    h = jnp.maximum(ln(conv(h, m.w2, m.b2, 1), m.g2, m.be2), 0.0)
    return h + sc


if __name__ == "__main__":
    key = jax.random.PRNGKey(0)
    k_param, k_x = jax.random.split(key)

    N, Cin, Cout, H, W = 4, 4, 8, 16, 16   # N=4 -> B=2 samples per grid step, 2 grid steps
    model = ResConvBlockPallas(k_param, Cin, Cout, shape=(H, W), dropout_rate=0.0)
    x = jax.random.normal(k_x, (N, Cin, H, W), jnp.float32)

    out = jax.block_until_ready(model(x))
    assert out.shape == (N, Cout, H, W)

    ref = jax.block_until_ready(_reference_forward(model, x))
    err = float(np.max(np.abs(np.asarray(out) - np.asarray(ref))))
    assert np.allclose(np.asarray(out), np.asarray(ref), rtol=2e-2, atol=2e-2), err

    print("KERNEL_OK")
</pallas_src>

<mosaic_0001>
module attributes {stable_mosaic.version = 11 : i64} {
  func.func @kernel(%arg0: i32, %arg1: memref<9x256xf32, #tpu.memory_space<vmem>>, %arg2: memref<2x8x256xf32, #tpu.memory_space<vmem>>, %arg3: memref<16x72xbf16, #tpu.memory_space<vmem>>, %arg4: memref<16x1xf32, #tpu.memory_space<vmem>>, %arg5: memref<8x256xf32, #tpu.memory_space<vmem>>, %arg6: memref<8x256xf32, #tpu.memory_space<vmem>>, %arg7: memref<8x72xbf16, #tpu.memory_space<vmem>>, %arg8: memref<8x1xf32, #tpu.memory_space<vmem>>, %arg9: memref<8x256xf32, #tpu.memory_space<vmem>>, %arg10: memref<8x256xf32, #tpu.memory_space<vmem>>, %arg11: memref<8x256xf32, #tpu.memory_space<vmem>>, %arg12: memref<8x256xf32, #tpu.memory_space<vmem>>, %arg13: memref<2x8x256xf32, #tpu.memory_space<vmem>>) attributes {dimension_semantics = [#tpu.dimension_semantics<parallel>], iteration_bounds = array<i64: 2>, scalar_prefetch = 0 : i64, scratch_operands = 0 : i64, tpu.core_type = #tpu.core_type<tc>, window_params = [{pipeline_mode = #tpu.pipeline_mode<synchronous>, transform_indices = @transform_0, window_bounds = array<i64: 9, 256>}, {transform_indices = @transform_1, window_bounds = array<i64: 2, 8, 256>}, {pipeline_mode = #tpu.pipeline_mode<synchronous>, transform_indices = @transform_2, window_bounds = array<i64: 16, 72>}, {pipeline_mode = #tpu.pipeline_mode<synchronous>, transform_indices = @transform_3, window_bounds = array<i64: 16, 1>}, {pipeline_mode = #tpu.pipeline_mode<synchronous>, transform_indices = @transform_4, window_bounds = array<i64: 8, 256>}, {pipeline_mode = #tpu.pipeline_mode<synchronous>, transform_indices = @transform_5, window_bounds = array<i64: 8, 256>}, {pipeline_mode = #tpu.pipeline_mode<synchronous>, transform_indices = @transform_6, window_bounds = array<i64: 8, 72>}, {pipeline_mode = #tpu.pipeline_mode<synchronous>, transform_indices = @transform_7, window_bounds = array<i64: 8, 1>}, {pipeline_mode = #tpu.pipeline_mode<synchronous>, transform_indices = @transform_8, window_bounds = array<i64: 8, 256>}, {pipeline_mode = #tpu.pipeline_mode<synchronous>, transform_indices = @transform_9, window_bounds = array<i64: 8, 256>}, {pipeline_mode = #tpu.pipeline_mode<synchronous>, transform_indices = @transform_10, window_bounds = array<i64: 8, 256>}, {pipeline_mode = #tpu.pipeline_mode<synchronous>, transform_indices = @transform_11, window_bounds = array<i64: 8, 256>}, {transform_indices = @transform_12, window_bounds = array<i64: 2, 8, 256>}]} {
    %c0 = arith.constant 0 : index
    %c0_0 = arith.constant 0 : index
    %0 = vector.load %arg1[%c0, %c0_0] : memref<9x256xf32, #tpu.memory_space<vmem>>, vector<9x256xf32>
    %c0_1 = arith.constant 0 : index
    %c0_2 = arith.constant 0 : index
    %1 = vector.load %arg3[%c0_1, %c0_2] : memref<16x72xbf16, #tpu.memory_space<vmem>>, vector<16x72xbf16>
    %c0_3 = arith.constant 0 : index
    %c0_4 = arith.constant 0 : index
    %2 = vector.load %arg4[%c0_3, %c0_4] : memref<16x1xf32, #tpu.memory_space<vmem>>, vector<16x1xf32>
    %c0_5 = arith.constant 0 : index
    %c0_6 = arith.constant 0 : index
    %3 = vector.load %arg7[%c0_5, %c0_6] : memref<8x72xbf16, #tpu.memory_space<vmem>>, vector<8x72xbf16>
    %c0_7 = arith.constant 0 : index
    %c0_8 = arith.constant 0 : index
    %4 = vector.load %arg8[%c0_7, %c0_8] : memref<8x1xf32, #tpu.memory_space<vmem>>, vector<8x1xf32>
    %c0_9 = arith.constant 0 : index
    %c0_10 = arith.constant 0 : index
    %5 = vector.load %arg5[%c0_9, %c0_10] : memref<8x256xf32, #tpu.memory_space<vmem>>, vector<8x256xf32>
    %c0_11 = arith.constant 0 : index
    %c0_12 = arith.constant 0 : index
    %6 = vector.load %arg6[%c0_11, %c0_12] : memref<8x256xf32, #tpu.memory_space<vmem>>, vector<8x256xf32>
    %c0_13 = arith.constant 0 : index
    %c0_14 = arith.constant 0 : index
    %7 = vector.load %arg9[%c0_13, %c0_14] : memref<8x256xf32, #tpu.memory_space<vmem>>, vector<8x256xf32>
    %c0_15 = arith.constant 0 : index
    %c0_16 = arith.constant 0 : index
    %8 = vector.load %arg10[%c0_15, %c0_16] : memref<8x256xf32, #tpu.memory_space<vmem>>, vector<8x256xf32>
    %c0_17 = arith.constant 0 : index
    %c0_18 = arith.constant 0 : index
    %9 = vector.load %arg11[%c0_17, %c0_18] : memref<8x256xf32, #tpu.memory_space<vmem>>, vector<8x256xf32>
    %c0_19 = arith.constant 0 : index
    %c0_20 = arith.constant 0 : index
    %10 = vector.load %arg12[%c0_19, %c0_20] : memref<8x256xf32, #tpu.memory_space<vmem>>, vector<8x256xf32>
    %c0_21 = arith.constant 0 : index
    %c0_22 = arith.constant 0 : index
    %c0_23 = arith.constant 0 : index
    %11 = vector.load %arg2[%c0_21, %c0_22, %c0_23] : memref<2x8x256xf32, #tpu.memory_space<vmem>>, vector<1x8x256xf32>
    %12 = vector.shape_cast %11 : vector<1x8x256xf32> to vector<8x256xf32>
    %c17_i32 = arith.constant 17 : i32
    %13 = tpu.dynamic_rotate %12 by %c17_i32 dim 1 : vector<8x256xf32>, i32 -> vector<8x256xf32>
    %14 = vector.extract_strided_slice %0 {offsets = [0, 0], sizes = [1, 256], strides = [1, 1]} : vector<9x256xf32> to vector<1x256xf32>
    %15 = vector.broadcast %14 : vector<1x256xf32> to vector<8x256xf32>
    %16 = arith.mulf %13, %15 : vector<8x256xf32>
    %c16_i32 = arith.constant 16 : i32
    %17 = tpu.dynamic_rotate %12 by %c16_i32 dim 1 : vector<8x256xf32>, i32 -> vector<8x256xf32>
    %18 = vector.extract_strided_slice %0 {offsets = [1, 0], sizes = [1, 256], strides = [1, 1]} : vector<9x256xf32> to vector<1x256xf32>
    %19 = vector.broadcast %18 : vector<1x256xf32> to vector<8x256xf32>
    %20 = arith.mulf %17, %19 : vector<8x256xf32>
    %c15_i32 = arith.constant 15 : i32
    %21 = tpu.dynamic_rotate %12 by %c15_i32 dim 1 : vector<8x256xf32>, i32 -> vector<8x256xf32>
    %22 = vector.extract_strided_slice %0 {offsets = [2, 0], sizes = [1, 256], strides = [1, 1]} : vector<9x256xf32> to vector<1x256xf32>
    %23 = vector.broadcast %22 : vector<1x256xf32> to vector<8x256xf32>
    %24 = arith.mulf %21, %23 : vector<8x256xf32>
    %c1_i32 = arith.constant 1 : i32
    %25 = tpu.dynamic_rotate %12 by %c1_i32 dim 1 : vector<8x256xf32>, i32 -> vector<8x256xf32>
    %26 = vector.extract_strided_slice %0 {offsets = [3, 0], sizes = [1, 256], strides = [1, 1]} : vector<9x256xf32> to vector<1x256xf32>
    %27 = vector.broadcast %26 : vector<1x256xf32> to vector<8x256xf32>
    %28 = arith.mulf %25, %27 : vector<8x256xf32>
    %c255_i32 = arith.constant 255 : i32
    %29 = tpu.dynamic_rotate %12 by %c255_i32 dim 1 : vector<8x256xf32>, i32 -> vector<8x256xf32>
    %30 = vector.extract_strided_slice %0 {offsets = [5, 0], sizes = [1, 256], strides = [1, 1]} : vector<9x256xf32> to vector<1x256xf32>
    %31 = vector.broadcast %30 : vector<1x256xf32> to vector<8x256xf32>
    %32 = arith.mulf %29, %31 : vector<8x256xf32>
    %c241_i32 = arith.constant 241 : i32
    %33 = tpu.dynamic_rotate %12 by %c241_i32 dim 1 : vector<8x256xf32>, i32 -> vector<8x256xf32>
    %34 = vector.extract_strided_slice %0 {offsets = [6, 0], sizes = [1, 256], strides = [1, 1]} : vector<9x256xf32> to vector<1x256xf32>
    %35 = vector.broadcast %34 : vector<1x256xf32> to vector<8x256xf32>
    %36 = arith.mulf %33, %35 : vector<8x256xf32>
    %c240_i32 = arith.constant 240 : i32
    %37 = tpu.dynamic_rotate %12 by %c240_i32 dim 1 : vector<8x256xf32>, i32 -> vector<8x256xf32>
    %38 = vector.extract_strided_slice %0 {offsets = [7, 0], sizes = [1, 256], strides = [1, 1]} : vector<9x256xf32> to vector<1x256xf32>
    %39 = vector.broadcast %38 : vector<1x256xf32> to vector<8x256xf32>
    %40 = arith.mulf %37, %39 : vector<8x256xf32>
    %c239_i32 = arith.constant 239 : i32
    %41 = tpu.dynamic_rotate %12 by %c239_i32 dim 1 : vector<8x256xf32>, i32 -> vector<8x256xf32>
    %42 = vector.extract_strided_slice %0 {offsets = [8, 0], sizes = [1, 256], strides = [1, 1]} : vector<9x256xf32> to vector<1x256xf32>
    %43 = vector.broadcast %42 : vector<1x256xf32> to vector<8x256xf32>
    %44 = arith.mulf %41, %43 : vector<8x256xf32>
    %45 = tpu.concatenate %16, %20, %24, %28, %12, %32, %36, %40, %44 in 0 : vector<8x256xf32>, vector<8x256xf32>, vector<8x256xf32>, vector<8x256xf32>, vector<8x256xf32>, vector<8x256xf32>, vector<8x256xf32>, vector<8x256xf32>, vector<8x256xf32> -> vector<72x256xf32>
    %46 = arith.truncf %45 : vector<72x256xf32> to vector<72x256xbf16>
    %cst = arith.constant dense<0.000000e+00> : vector<16x256xf32>
    %47 = tpu.matmul %1, %46, %cst {dimension_numbers = #tpu.dot_dimension_numbers<[1], [0], [0], [1], [0, 0, 1, 1], [], []>} : vector<16x72xbf16>, vector<72x256xbf16>, vector<16x256xf32> -> vector<16x256xf32>
    %48 = vector.broadcast %2 : vector<16x1xf32> to vector<16x256xf32>
    %49 = arith.addf %47, %48 : vector<16x256xf32>
    %50 = vector.extract_strided_slice %49 {offsets = [8, 0], sizes = [8, 256], strides = [1, 1]} : vector<16x256xf32> to vector<8x256xf32>
    %51 = vector.shape_cast %50 : vector<8x256xf32> to vector<1x8x256xf32>
    %cst_24 = arith.constant dense<0.000000e+00> : vector<1xf32>
    %52 = vector.multi_reduction <add>, %51, %cst_24 [1, 2] : vector<1x8x256xf32> to vector<1xf32>
    %53 = vector.shape_cast %52 : vector<1xf32> to vector<1x1x1xf32>
    %54 = vector.extract %53[0, 0, 0] : f32 from vector<1x1x1xf32>
    %55 = vector.broadcast %54 : f32 to vector<1x1xf32>
    %cst_25 = arith.constant 4.8828125E-4 : f32
    %56 = vector.broadcast %cst_25 : f32 to vector<1x1xf32>
    %57 = arith.mulf %55, %56 : vector<1x1xf32>
    %58 = arith.mulf %50, %50 : vector<8x256xf32>
    %59 = vector.shape_cast %58 : vector<8x256xf32> to vector<1x8x256xf32>
    %cst_26 = arith.constant dense<0.000000e+00> : vector<1xf32>
    %60 = vector.multi_reduction <add>, %59, %cst_26 [1, 2] : vector<1x8x256xf32> to vector<1xf32>
    %61 = vector.shape_cast %60 : vector<1xf32> to vector<1x1x1xf32>
    %62 = vector.extract %61[0, 0, 0] : f32 from vector<1x1x1xf32>
    %63 = vector.broadcast %62 : f32 to vector<1x1xf32>
    %cst_27 = arith.constant 4.8828125E-4 : f32
    %64 = vector.broadcast %cst_27 : f32 to vector<1x1xf32>
    %65 = arith.mulf %63, %64 : vector<1x1xf32>
    %66 = arith.mulf %57, %57 : vector<1x1xf32>
    %67 = arith.subf %65, %66 : vector<1x1xf32>
    %cst_28 = arith.constant 0.000000e+00 : f32
    %68 = vector.broadcast %cst_28 : f32 to vector<1x1xf32>
    %69 = arith.maximumf %67, %68 : vector<1x1xf32>
    %70 = vector.broadcast %57 : vector<1x1xf32> to vector<8x256xf32>
    %71 = arith.subf %50, %70 : vector<8x256xf32>
    %cst_29 = arith.constant 9.99999974E-6 : f32
    %72 = vector.broadcast %cst_29 : f32 to vector<1x1xf32>
    %73 = arith.addf %69, %72 : vector<1x1xf32>
    %74 = math.rsqrt %73 : vector<1x1xf32>
    %75 = vector.broadcast %74 : vector<1x1xf32> to vector<8x256xf32>
    %76 = arith.mulf %71, %75 : vector<8x256xf32>
    %77 = arith.mulf %76, %9 : vector<8x256xf32>
    %78 = arith.addf %77, %10 : vector<8x256xf32>
    %79 = vector.extract_strided_slice %49 {offsets = [0, 0], sizes = [8, 256], strides = [1, 1]} : vector<16x256xf32> to vector<8x256xf32>
    %80 = vector.shape_cast %79 : vector<8x256xf32> to vector<1x8x256xf32>
    %cst_30 = arith.constant dense<0.000000e+00> : vector<1xf32>
    %81 = vector.multi_reduction <add>, %80, %cst_30 [1, 2] : vector<1x8x256xf32> to vector<1xf32>
    %82 = vector.shape_cast %81 : vector<1xf32> to vector<1x1x1xf32>
    %83 = vector.extract %82[0, 0, 0] : f32 from vector<1x1x1xf32>
    %84 = vector.broadcast %83 : f32 to vector<1x1xf32>
    %cst_31 = arith.constant 4.8828125E-4 : f32
    %85 = vector.broadcast %cst_31 : f32 to vector<1x1xf32>
    %86 = arith.mulf %84, %85 : vector<1x1xf32>
    %87 = arith.mulf %79, %79 : vector<8x256xf32>
    %88 = vector.shape_cast %87 : vector<8x256xf32> to vector<1x8x256xf32>
    %cst_32 = arith.constant dense<0.000000e+00> : vector<1xf32>
    %89 = vector.multi_reduction <add>, %88, %cst_32 [1, 2] : vector<1x8x256xf32> to vector<1xf32>
    %90 = vector.shape_cast %89 : vector<1xf32> to vector<1x1x1xf32>
    %91 = vector.extract %90[0, 0, 0] : f32 from vector<1x1x1xf32>
    %92 = vector.broadcast %91 : f32 to vector<1x1xf32>
    %cst_33 = arith.constant 4.8828125E-4 : f32
    %93 = vector.broadcast %cst_33 : f32 to vector<1x1xf32>
    %94 = arith.mulf %92, %93 : vector<1x1xf32>
    %95 = arith.mulf %86, %86 : vector<1x1xf32>
    %96 = arith.subf %94, %95 : vector<1x1xf32>
    %cst_34 = arith.constant 0.000000e+00 : f32
    %97 = vector.broadcast %cst_34 : f32 to vector<1x1xf32>
    %98 = arith.maximumf %96, %97 : vector<1x1xf32>
    %99 = vector.broadcast %86 : vector<1x1xf32> to vector<8x256xf32>
    %100 = arith.subf %79, %99 : vector<8x256xf32>
    %cst_35 = arith.constant 9.99999974E-6 : f32
    %101 = vector.broadcast %cst_35 : f32 to vector<1x1xf32>
    %102 = arith.addf %98, %101 : vector<1x1xf32>
    %103 = math.rsqrt %102 : vector<1x1xf32>
    %104 = vector.broadcast %103 : vector<1x1xf32> to vector<8x256xf32>
    %105 = arith.mulf %100, %104 : vector<8x256xf32>
    %106 = arith.mulf %105, %5 : vector<8x256xf32>
    %107 = arith.addf %106, %6 : vector<8x256xf32>
    %cst_36 = arith.constant 0.000000e+00 : f32
    %108 = vector.broadcast %cst_36 : f32 to vector<8x256xf32>
    %109 = arith.maximumf %107, %108 : vector<8x256xf32>
    %c17_i32_37 = arith.constant 17 : i32
    %110 = tpu.dynamic_rotate %109 by %c17_i32_37 dim 1 : vector<8x256xf32>, i32 -> vector<8x256xf32>
    %111 = vector.extract_strided_slice %0 {offsets = [0, 0], sizes = [1, 256], strides = [1, 1]} : vector<9x256xf32> to vector<1x256xf32>
    %112 = vector.broadcast %111 : vector<1x256xf32> to vector<8x256xf32>
    %113 = arith.mulf %110, %112 : vector<8x256xf32>
    %c16_i32_38 = arith.constant 16 : i32
    %114 = tpu.dynamic_rotate %109 by %c16_i32_38 dim 1 : vector<8x256xf32>, i32 -> vector<8x256xf32>
    %115 = vector.extract_strided_slice %0 {offsets = [1, 0], sizes = [1, 256], strides = [1, 1]} : vector<9x256xf32> to vector<1x256xf32>
    %116 = vector.broadcast %115 : vector<1x256xf32> to vector<8x256xf32>
    %117 = arith.mulf %114, %116 : vector<8x256xf32>
    %c15_i32_39 = arith.constant 15 : i32
    %118 = tpu.dynamic_rotate %109 by %c15_i32_39 dim 1 : vector<8x256xf32>, i32 -> vector<8x256xf32>
    %119 = vector.extract_strided_slice %0 {offsets = [2, 0], sizes = [1, 256], strides = [1, 1]} : vector<9x256xf32> to vector<1x256xf32>
    %120 = vector.broadcast %119 : vector<1x256xf32> to vector<8x256xf32>
    %121 = arith.mulf %118, %120 : vector<8x256xf32>
    %c1_i32_40 = arith.constant 1 : i32
    %122 = tpu.dynamic_rotate %109 by %c1_i32_40 dim 1 : vector<8x256xf32>, i32 -> vector<8x256xf32>
    %123 = vector.extract_strided_slice %0 {offsets = [3, 0], sizes = [1, 256], strides = [1, 1]} : vector<9x256xf32> to vector<1x256xf32>
    %124 = vector.broadcast %123 : vector<1x256xf32> to vector<8x256xf32>
    %125 = arith.mulf %122, %124 : vector<8x256xf32>
    %c255_i32_41 = arith.constant 255 : i32
    %126 = tpu.dynamic_rotate %109 by %c255_i32_41 dim 1 : vector<8x256xf32>, i32 -> vector<8x256xf32>
    %127 = vector.extract_strided_slice %0 {offsets = [5, 0], sizes = [1, 256], strides = [1, 1]} : vector<9x256xf32> to vector<1x256xf32>
    %128 = vector.broadcast %127 : vector<1x256xf32> to vector<8x256xf32>
    %129 = arith.mulf %126, %128 : vector<8x256xf32>
    %c241_i32_42 = arith.constant 241 : i32
    %130 = tpu.dynamic_rotate %109 by %c241_i32_42 dim 1 : vector<8x256xf32>, i32 -> vector<8x256xf32>
    %131 = vector.extract_strided_slice %0 {offsets = [6, 0], sizes = [1, 256], strides = [1, 1]} : vector<9x256xf32> to vector<1x256xf32>
    %132 = vector.broadcast %131 : vector<1x256xf32> to vector<8x256xf32>
    %133 = arith.mulf %130, %132 : vector<8x256xf32>
    %c240_i32_43 = arith.constant 240 : i32
    %134 = tpu.dynamic_rotate %109 by %c240_i32_43 dim 1 : vector<8x256xf32>, i32 -> vector<8x256xf32>
    %135 = vector.extract_strided_slice %0 {offsets = [7, 0], sizes = [1, 256], strides = [1, 1]} : vector<9x256xf32> to vector<1x256xf32>
    %136 = vector.broadcast %135 : vector<1x256xf32> to vector<8x256xf32>
    %137 = arith.mulf %134, %136 : vector<8x256xf32>
    %c239_i32_44 = arith.constant 239 : i32
    %138 = tpu.dynamic_rotate %109 by %c239_i32_44 dim 1 : vector<8x256xf32>, i32 -> vector<8x256xf32>
    %139 = vector.extract_strided_slice %0 {offsets = [8, 0], sizes = [1, 256], strides = [1, 1]} : vector<9x256xf32> to vector<1x256xf32>
    %140 = vector.broadcast %139 : vector<1x256xf32> to vector<8x256xf32>
    %141 = arith.mulf %138, %140 : vector<8x256xf32>
    %142 = tpu.concatenate %113, %117, %121, %125, %109, %129, %133, %137, %141 in 0 : vector<8x256xf32>, vector<8x256xf32>, vector<8x256xf32>, vector<8x256xf32>, vector<8x256xf32>, vector<8x256xf32>, vector<8x256xf32>, vector<8x256xf32>, vector<8x256xf32> -> vector<72x256xf32>
    %143 = arith.truncf %142 : vector<72x256xf32> to vector<72x256xbf16>
    %cst_45 = arith.constant dense<0.000000e+00> : vector<8x256xf32>
    %144 = tpu.matmul %3, %143, %cst_45 {dimension_numbers = #tpu.dot_dimension_numbers<[1], [0], [0], [1], [0, 0, 1, 1], [], []>} : vector<8x72xbf16>, vector<72x256xbf16>, vector<8x256xf32> -> vector<8x256xf32>
    %145 = vector.broadcast %4 : vector<8x1xf32> to vector<8x256xf32>
    %146 = arith.addf %144, %145 : vector<8x256xf32>
    %147 = vector.shape_cast %146 : vector<8x256xf32> to vector<1x8x256xf32>
    %cst_46 = arith.constant dense<0.000000e+00> : vector<1xf32>
    %148 = vector.multi_reduction <add>, %147, %cst_46 [1, 2] : vector<1x8x256xf32> to vector<1xf32>
    %149 = vector.shape_cast %148 : vector<1xf32> to vector<1x1x1xf32>
    %150 = vector.extract %149[0, 0, 0] : f32 from vector<1x1x1xf32>
    %151 = vector.broadcast %150 : f32 to vector<1x1xf32>
    %cst_47 = arith.constant 4.8828125E-4 : f32
    %152 = vector.broadcast %cst_47 : f32 to vector<1x1xf32>
    %153 = arith.mulf %151, %152 : vector<1x1xf32>
    %154 = arith.mulf %146, %146 : vector<8x256xf32>
    %155 = vector.shape_cast %154 : vector<8x256xf32> to vector<1x8x256xf32>
    %cst_48 = arith.constant dense<0.000000e+00> : vector<1xf32>
    %156 = vector.multi_reduction <add>, %155, %cst_48 [1, 2] : vector<1x8x256xf32> to vector<1xf32>
    %157 = vector.shape_cast %156 : vector<1xf32> to vector<1x1x1xf32>
    %158 = vector.extract %157[0, 0, 0] : f32 from vector<1x1x1xf32>
    %159 = vector.broadcast %158 : f32 to vector<1x1xf32>
    %cst_49 = arith.constant 4.8828125E-4 : f32
    %160 = vector.broadcast %cst_49 : f32 to vector<1x1xf32>
    %161 = arith.mulf %159, %160 : vector<1x1xf32>
    %162 = arith.mulf %153, %153 : vector<1x1xf32>
    %163 = arith.subf %161, %162 : vector<1x1xf32>
    %cst_50 = arith.constant 0.000000e+00 : f32
    %164 = vector.broadcast %cst_50 : f32 to vector<1x1xf32>
    %165 = arith.maximumf %163, %164 : vector<1x1xf32>
    %166 = vector.broadcast %153 : vector<1x1xf32> to vector<8x256xf32>
    %167 = arith.subf %146, %166 : vector<8x256xf32>
    %cst_51 = arith.constant 9.99999974E-6 : f32
    %168 = vector.broadcast %cst_51 : f32 to vector<1x1xf32>
    %169 = arith.addf %165, %168 : vector<1x1xf32>
    %170 = math.rsqrt %169 : vector<1x1xf32>
    %171 = vector.broadcast %170 : vector<1x1xf32> to vector<8x256xf32>
    %172 = arith.mulf %167, %171 : vector<8x256xf32>
    %173 = arith.mulf %172, %7 : vector<8x256xf32>
    %174 = arith.addf %173, %8 : vector<8x256xf32>
    %cst_52 = arith.constant 0.000000e+00 : f32
    %175 = vector.broadcast %cst_52 : f32 to vector<8x256xf32>
    %176 = arith.maximumf %174, %175 : vector<8x256xf32>
    %177 = arith.addf %176, %78 : vector<8x256xf32>
    %c0_53 = arith.constant 0 : index
    %c0_54 = arith.constant 0 : index
    %c0_55 = arith.constant 0 : index
    %178 = vector.load %arg13[%c0_53, %c0_54, %c0_55] : memref<2x8x256xf32, #tpu.memory_space<vmem>>, vector<1x8x256xf32>
    %179 = vector.shape_cast %178 : vector<1x8x256xf32> to vector<8x256xf32>
    %180 = vector.shape_cast %177 : vector<8x256xf32> to vector<1x8x256xf32>
    tpu.vector_store %arg13[%c0_53, %c0_54, %c0_55], %180 {strides = array<i32>} : memref<2x8x256xf32, #tpu.memory_space<vmem>>, vector<1x8x256xf32>,
    %c1 = arith.constant 1 : index
    %c0_56 = arith.constant 0 : index
    %c0_57 = arith.constant 0 : index
    %181 = vector.load %arg2[%c1, %c0_56, %c0_57] : memref<2x8x256xf32, #tpu.memory_space<vmem>>, vector<1x8x256xf32>
    %182 = vector.shape_cast %181 : vector<1x8x256xf32> to vector<8x256xf32>
    %c17_i32_58 = arith.constant 17 : i32
    %183 = tpu.dynamic_rotate %182 by %c17_i32_58 dim 1 : vector<8x256xf32>, i32 -> vector<8x256xf32>
    %184 = vector.extract_strided_slice %0 {offsets = [0, 0], sizes = [1, 256], strides = [1, 1]} : vector<9x256xf32> to vector<1x256xf32>
    %185 = vector.broadcast %184 : vector<1x256xf32> to vector<8x256xf32>
    %186 = arith.mulf %183, %185 : vector<8x256xf32>
    %c16_i32_59 = arith.constant 16 : i32
    %187 = tpu.dynamic_rotate %182 by %c16_i32_59 dim 1 : vector<8x256xf32>, i32 -> vector<8x256xf32>
    %188 = vector.extract_strided_slice %0 {offsets = [1, 0], sizes = [1, 256], strides = [1, 1]} : vector<9x256xf32> to vector<1x256xf32>
    %189 = vector.broadcast %188 : vector<1x256xf32> to vector<8x256xf32>
    %190 = arith.mulf %187, %189 : vector<8x256xf32>
    %c15_i32_60 = arith.constant 15 : i32
    %191 = tpu.dynamic_rotate %182 by %c15_i32_60 dim 1 : vector<8x256xf32>, i32 -> vector<8x256xf32>
    %192 = vector.extract_strided_slice %0 {offsets = [2, 0], sizes = [1, 256], strides = [1, 1]} : vector<9x256xf32> to vector<1x256xf32>
    %193 = vector.broadcast %192 : vector<1x256xf32> to vector<8x256xf32>
    %194 = arith.mulf %191, %193 : vector<8x256xf32>
    %c1_i32_61 = arith.constant 1 : i32
    %195 = tpu.dynamic_rotate %182 by %c1_i32_61 dim 1 : vector<8x256xf32>, i32 -> vector<8x256xf32>
    %196 = vector.extract_strided_slice %0 {offsets = [3, 0], sizes = [1, 256], strides = [1, 1]} : vector<9x256xf32> to vector<1x256xf32>
    %197 = vector.broadcast %196 : vector<1x256xf32> to vector<8x256xf32>
    %198 = arith.mulf %195, %197 : vector<8x256xf32>
    %c255_i32_62 = arith.constant 255 : i32
    %199 = tpu.dynamic_rotate %182 by %c255_i32_62 dim 1 : vector<8x256xf32>, i32 -> vector<8x256xf32>
    %200 = vector.extract_strided_slice %0 {offsets = [5, 0], sizes = [1, 256], strides = [1, 1]} : vector<9x256xf32> to vector<1x256xf32>
    %201 = vector.broadcast %200 : vector<1x256xf32> to vector<8x256xf32>
    %202 = arith.mulf %199, %201 : vector<8x256xf32>
    %c241_i32_63 = arith.constant 241 : i32
    %203 = tpu.dynamic_rotate %182 by %c241_i32_63 dim 1 : vector<8x256xf32>, i32 -> vector<8x256xf32>
    %204 = vector.extract_strided_slice %0 {offsets = [6, 0], sizes = [1, 256], strides = [1, 1]} : vector<9x256xf32> to vector<1x256xf32>
    %205 = vector.broadcast %204 : vector<1x256xf32> to vector<8x256xf32>
    %206 = arith.mulf %203, %205 : vector<8x256xf32>
    %c240_i32_64 = arith.constant 240 : i32
    %207 = tpu.dynamic_rotate %182 by %c240_i32_64 dim 1 : vector<8x256xf32>, i32 -> vector<8x256xf32>
    %208 = vector.extract_strided_slice %0 {offsets = [7, 0], sizes = [1, 256], strides = [1, 1]} : vector<9x256xf32> to vector<1x256xf32>
    %209 = vector.broadcast %208 : vector<1x256xf32> to vector<8x256xf32>
    %210 = arith.mulf %207, %209 : vector<8x256xf32>
    %c239_i32_65 = arith.constant 239 : i32
    %211 = tpu.dynamic_rotate %182 by %c239_i32_65 dim 1 : vector<8x256xf32>, i32 -> vector<8x256xf32>
    %212 = vector.extract_strided_slice %0 {offsets = [8, 0], sizes = [1, 256], strides = [1, 1]} : vector<9x256xf32> to vector<1x256xf32>
    %213 = vector.broadcast %212 : vector<1x256xf32> to vector<8x256xf32>
    %214 = arith.mulf %211, %213 : vector<8x256xf32>
    %215 = tpu.concatenate %186, %190, %194, %198, %182, %202, %206, %210, %214 in 0 : vector<8x256xf32>, vector<8x256xf32>, vector<8x256xf32>, vector<8x256xf32>, vector<8x256xf32>, vector<8x256xf32>, vector<8x256xf32>, vector<8x256xf32>, vector<8x256xf32> -> vector<72x256xf32>
    %216 = arith.truncf %215 : vector<72x256xf32> to vector<72x256xbf16>
    %cst_66 = arith.constant dense<0.000000e+00> : vector<16x256xf32>
    %217 = tpu.matmul %1, %216, %cst_66 {dimension_numbers = #tpu.dot_dimension_numbers<[1], [0], [0], [1], [0, 0, 1, 1], [], []>} : vector<16x72xbf16>, vector<72x256xbf16>, vector<16x256xf32> -> vector<16x256xf32>
    %218 = vector.broadcast %2 : vector<16x1xf32> to vector<16x256xf32>
    %219 = arith.addf %217, %218 : vector<16x256xf32>
    %220 = vector.extract_strided_slice %219 {offsets = [8, 0], sizes = [8, 256], strides = [1, 1]} : vector<16x256xf32> to vector<8x256xf32>
    %221 = vector.shape_cast %220 : vector<8x256xf32> to vector<1x8x256xf32>
    %cst_67 = arith.constant dense<0.000000e+00> : vector<1xf32>
    %222 = vector.multi_reduction <add>, %221, %cst_67 [1, 2] : vector<1x8x256xf32> to vector<1xf32>
    %223 = vector.shape_cast %222 : vector<1xf32> to vector<1x1x1xf32>
    %224 = vector.extract %223[0, 0, 0] : f32 from vector<1x1x1xf32>
    %225 = vector.broadcast %224 : f32 to vector<1x1xf32>
    %cst_68 = arith.constant 4.8828125E-4 : f32
    %226 = vector.broadcast %cst_68 : f32 to vector<1x1xf32>
    %227 = arith.mulf %225, %226 : vector<1x1xf32>
    %228 = arith.mulf %220, %220 : vector<8x256xf32>
    %229 = vector.shape_cast %228 : vector<8x256xf32> to vector<1x8x256xf32>
    %cst_69 = arith.constant dense<0.000000e+00> : vector<1xf32>
    %230 = vector.multi_reduction <add>, %229, %cst_69 [1, 2] : vector<1x8x256xf32> to vector<1xf32>
    %231 = vector.shape_cast %230 : vector<1xf32> to vector<1x1x1xf32>
    %232 = vector.extract %231[0, 0, 0] : f32 from vector<1x1x1xf32>
    %233 = vector.broadcast %232 : f32 to vector<1x1xf32>
    %cst_70 = arith.constant 4.8828125E-4 : f32
    %234 = vector.broadcast %cst_70 : f32 to vector<1x1xf32>
    %235 = arith.mulf %233, %234 : vector<1x1xf32>
    %236 = arith.mulf %227, %227 : vector<1x1xf32>
    %237 = arith.subf %235, %236 : vector<1x1xf32>
    %cst_71 = arith.constant 0.000000e+00 : f32
    %238 = vector.broadcast %cst_71 : f32 to vector<1x1xf32>
    %239 = arith.maximumf %237, %238 : vector<1x1xf32>
    %240 = vector.broadcast %227 : vector<1x1xf32> to vector<8x256xf32>
    %241 = arith.subf %220, %240 : vector<8x256xf32>
    %cst_72 = arith.constant 9.99999974E-6 : f32
    %242 = vector.broadcast %cst_72 : f32 to vector<1x1xf32>
    %243 = arith.addf %239, %242 : vector<1x1xf32>
    %244 = math.rsqrt %243 : vector<1x1xf32>
    %245 = vector.broadcast %244 : vector<1x1xf32> to vector<8x256xf32>
    %246 = arith.mulf %241, %245 : vector<8x256xf32>
    %247 = arith.mulf %246, %9 : vector<8x256xf32>
    %248 = arith.addf %247, %10 : vector<8x256xf32>
    %249 = vector.extract_strided_slice %219 {offsets = [0, 0], sizes = [8, 256], strides = [1, 1]} : vector<16x256xf32> to vector<8x256xf32>
    %250 = vector.shape_cast %249 : vector<8x256xf32> to vector<1x8x256xf32>
    %cst_73 = arith.constant dense<0.000000e+00> : vector<1xf32>
    %251 = vector.multi_reduction <add>, %250, %cst_73 [1, 2] : vector<1x8x256xf32> to vector<1xf32>
    %252 = vector.shape_cast %251 : vector<1xf32> to vector<1x1x1xf32>
    %253 = vector.extract %252[0, 0, 0] : f32 from vector<1x1x1xf32>
    %254 = vector.broadcast %253 : f32 to vector<1x1xf32>
    %cst_74 = arith.constant 4.8828125E-4 : f32
    %255 = vector.broadcast %cst_74 : f32 to vector<1x1xf32>
    %256 = arith.mulf %254, %255 : vector<1x1xf32>
    %257 = arith.mulf %249, %249 : vector<8x256xf32>
    %258 = vector.shape_cast %257 : vector<8x256xf32> to vector<1x8x256xf32>
    %cst_75 = arith.constant dense<0.000000e+00> : vector<1xf32>
    %259 = vector.multi_reduction <add>, %258, %cst_75 [1, 2] : vector<1x8x256xf32> to vector<1xf32>
    %260 = vector.shape_cast %259 : vector<1xf32> to vector<1x1x1xf32>
    %261 = vector.extract %260[0, 0, 0] : f32 from vector<1x1x1xf32>
    %262 = vector.broadcast %261 : f32 to vector<1x1xf32>
    %cst_76 = arith.constant 4.8828125E-4 : f32
    %263 = vector.broadcast %cst_76 : f32 to vector<1x1xf32>
    %264 = arith.mulf %262, %263 : vector<1x1xf32>
    %265 = arith.mulf %256, %256 : vector<1x1xf32>
    %266 = arith.subf %264, %265 : vector<1x1xf32>
    %cst_77 = arith.constant 0.000000e+00 : f32
    %267 = vector.broadcast %cst_77 : f32 to vector<1x1xf32>
    %268 = arith.maximumf %266, %267 : vector<1x1xf32>
    %269 = vector.broadcast %256 : vector<1x1xf32> to vector<8x256xf32>
    %270 = arith.subf %249, %269 : vector<8x256xf32>
    %cst_78 = arith.constant 9.99999974E-6 : f32
    %271 = vector.broadcast %cst_78 : f32 to vector<1x1xf32>
    %272 = arith.addf %268, %271 : vector<1x1xf32>
    %273 = math.rsqrt %272 : vector<1x1xf32>
    %274 = vector.broadcast %273 : vector<1x1xf32> to vector<8x256xf32>
    %275 = arith.mulf %270, %274 : vector<8x256xf32>
    %276 = arith.mulf %275, %5 : vector<8x256xf32>
    %277 = arith.addf %276, %6 : vector<8x256xf32>
    %cst_79 = arith.constant 0.000000e+00 : f32
    %278 = vector.broadcast %cst_79 : f32 to vector<8x256xf32>
    %279 = arith.maximumf %277, %278 : vector<8x256xf32>
    %c17_i32_80 = arith.constant 17 : i32
    %280 = tpu.dynamic_rotate %279 by %c17_i32_80 dim 1 : vector<8x256xf32>, i32 -> vector<8x256xf32>
    %281 = vector.extract_strided_slice %0 {offsets = [0, 0], sizes = [1, 256], strides = [1, 1]} : vector<9x256xf32> to vector<1x256xf32>
    %282 = vector.broadcast %281 : vector<1x256xf32> to vector<8x256xf32>
    %283 = arith.mulf %280, %282 : vector<8x256xf32>
    %c16_i32_81 = arith.constant 16 : i32
    %284 = tpu.dynamic_rotate %279 by %c16_i32_81 dim 1 : vector<8x256xf32>, i32 -> vector<8x256xf32>
    %285 = vector.extract_strided_slice %0 {offsets = [1, 0], sizes = [1, 256], strides = [1, 1]} : vector<9x256xf32> to vector<1x256xf32>
    %286 = vector.broadcast %285 : vector<1x256xf32> to vector<8x256xf32>
    %287 = arith.mulf %284, %286 : vector<8x256xf32>
    %c15_i32_82 = arith.constant 15 : i32
    %288 = tpu.dynamic_rotate %279 by %c15_i32_82 dim 1 : vector<8x256xf32>, i32 -> vector<8x256xf32>
    %289 = vector.extract_strided_slice %0 {offsets = [2, 0], sizes = [1, 256], strides = [1, 1]} : vector<9x256xf32> to vector<1x256xf32>
    %290 = vector.broadcast %289 : vector<1x256xf32> to vector<8x256xf32>
    %291 = arith.mulf %288, %290 : vector<8x256xf32>
    %c1_i32_83 = arith.constant 1 : i32
    %292 = tpu.dynamic_rotate %279 by %c1_i32_83 dim 1 : vector<8x256xf32>, i32 -> vector<8x256xf32>
    %293 = vector.extract_strided_slice %0 {offsets = [3, 0], sizes = [1, 256], strides = [1, 1]} : vector<9x256xf32> to vector<1x256xf32>
    %294 = vector.broadcast %293 : vector<1x256xf32> to vector<8x256xf32>
    %295 = arith.mulf %292, %294 : vector<8x256xf32>
    %c255_i32_84 = arith.constant 255 : i32
    %296 = tpu.dynamic_rotate %279 by %c255_i32_84 dim 1 : vector<8x256xf32>, i32 -> vector<8x256xf32>
    %297 = vector.extract_strided_slice %0 {offsets = [5, 0], sizes = [1, 256], strides = [1, 1]} : vector<9x256xf32> to vector<1x256xf32>
    %298 = vector.broadcast %297 : vector<1x256xf32> to vector<8x256xf32>
    %299 = arith.mulf %296, %298 : vector<8x256xf32>
    %c241_i32_85 = arith.constant 241 : i32
    %300 = tpu.dynamic_rotate %279 by %c241_i32_85 dim 1 : vector<8x256xf32>, i32 -> vector<8x256xf32>
    %301 = vector.extract_strided_slice %0 {offsets = [6, 0], sizes = [1, 256], strides = [1, 1]} : vector<9x256xf32> to vector<1x256xf32>
    %302 = vector.broadcast %301 : vector<1x256xf32> to vector<8x256xf32>
    %303 = arith.mulf %300, %302 : vector<8x256xf32>
    %c240_i32_86 = arith.constant 240 : i32
    %304 = tpu.dynamic_rotate %279 by %c240_i32_86 dim 1 : vector<8x256xf32>, i32 -> vector<8x256xf32>
    %305 = vector.extract_strided_slice %0 {offsets = [7, 0], sizes = [1, 256], strides = [1, 1]} : vector<9x256xf32> to vector<1x256xf32>
    %306 = vector.broadcast %305 : vector<1x256xf32> to vector<8x256xf32>
    %307 = arith.mulf %304, %306 : vector<8x256xf32>
    %c239_i32_87 = arith.constant 239 : i32
    %308 = tpu.dynamic_rotate %279 by %c239_i32_87 dim 1 : vector<8x256xf32>, i32 -> vector<8x256xf32>
    %309 = vector.extract_strided_slice %0 {offsets = [8, 0], sizes = [1, 256], strides = [1, 1]} : vector<9x256xf32> to vector<1x256xf32>
    %310 = vector.broadcast %309 : vector<1x256xf32> to vector<8x256xf32>
    %311 = arith.mulf %308, %310 : vector<8x256xf32>
    %312 = tpu.concatenate %283, %287, %291, %295, %279, %299, %303, %307, %311 in 0 : vector<8x256xf32>, vector<8x256xf32>, vector<8x256xf32>, vector<8x256xf32>, vector<8x256xf32>, vector<8x256xf32>, vector<8x256xf32>, vector<8x256xf32>, vector<8x256xf32> -> vector<72x256xf32>
    %313 = arith.truncf %312 : vector<72x256xf32> to vector<72x256xbf16>
    %cst_88 = arith.constant dense<0.000000e+00> : vector<8x256xf32>
    %314 = tpu.matmul %3, %313, %cst_88 {dimension_numbers = #tpu.dot_dimension_numbers<[1], [0], [0], [1], [0, 0, 1, 1], [], []>} : vector<8x72xbf16>, vector<72x256xbf16>, vector<8x256xf32> -> vector<8x256xf32>
    %315 = vector.broadcast %4 : vector<8x1xf32> to vector<8x256xf32>
    %316 = arith.addf %314, %315 : vector<8x256xf32>
    %317 = vector.shape_cast %316 : vector<8x256xf32> to vector<1x8x256xf32>
    %cst_89 = arith.constant dense<0.000000e+00> : vector<1xf32>
    %318 = vector.multi_reduction <add>, %317, %cst_89 [1, 2] : vector<1x8x256xf32> to vector<1xf32>
    %319 = vector.shape_cast %318 : vector<1xf32> to vector<1x1x1xf32>
    %320 = vector.extract %319[0, 0, 0] : f32 from vector<1x1x1xf32>
    %321 = vector.broadcast %320 : f32 to vector<1x1xf32>
    %cst_90 = arith.constant 4.8828125E-4 : f32
    %322 = vector.broadcast %cst_90 : f32 to vector<1x1xf32>
    %323 = arith.mulf %321, %322 : vector<1x1xf32>
    %324 = arith.mulf %316, %316 : vector<8x256xf32>
    %325 = vector.shape_cast %324 : vector<8x256xf32> to vector<1x8x256xf32>
    %cst_91 = arith.constant dense<0.000000e+00> : vector<1xf32>
    %326 = vector.multi_reduction <add>, %325, %cst_91 [1, 2] : vector<1x8x256xf32> to vector<1xf32>
    %327 = vector.shape_cast %326 : vector<1xf32> to vector<1x1x1xf32>
    %328 = vector.extract %327[0, 0, 0] : f32 from vector<1x1x1xf32>
    %329 = vector.broadcast %328 : f32 to vector<1x1xf32>
    %cst_92 = arith.constant 4.8828125E-4 : f32
    %330 = vector.broadcast %cst_92 : f32 to vector<1x1xf32>
    %331 = arith.mulf %329, %330 : vector<1x1xf32>
    %332 = arith.mulf %323, %323 : vector<1x1xf32>
    %333 = arith.subf %331, %332 : vector<1x1xf32>
    %cst_93 = arith.constant 0.000000e+00 : f32
    %334 = vector.broadcast %cst_93 : f32 to vector<1x1xf32>
    %335 = arith.maximumf %333, %334 : vector<1x1xf32>
    %336 = vector.broadcast %323 : vector<1x1xf32> to vector<8x256xf32>
    %337 = arith.subf %316, %336 : vector<8x256xf32>
    %cst_94 = arith.constant 9.99999974E-6 : f32
    %338 = vector.broadcast %cst_94 : f32 to vector<1x1xf32>
    %339 = arith.addf %335, %338 : vector<1x1xf32>
    %340 = math.rsqrt %339 : vector<1x1xf32>
    %341 = vector.broadcast %340 : vector<1x1xf32> to vector<8x256xf32>
    %342 = arith.mulf %337, %341 : vector<8x256xf32>
    %343 = arith.mulf %342, %7 : vector<8x256xf32>
    %344 = arith.addf %343, %8 : vector<8x256xf32>
    %cst_95 = arith.constant 0.000000e+00 : f32
    %345 = vector.broadcast %cst_95 : f32 to vector<8x256xf32>
    %346 = arith.maximumf %344, %345 : vector<8x256xf32>
    %347 = arith.addf %346, %248 : vector<8x256xf32>
    %c1_96 = arith.constant 1 : index
    %c0_97 = arith.constant 0 : index
    %c0_98 = arith.constant 0 : index
    %348 = vector.load %arg13[%c1_96, %c0_97, %c0_98] : memref<2x8x256xf32, #tpu.memory_space<vmem>>, vector<1x8x256xf32>
    %349 = vector.shape_cast %348 : vector<1x8x256xf32> to vector<8x256xf32>
    %350 = vector.shape_cast %347 : vector<8x256xf32> to vector<1x8x256xf32>
    tpu.vector_store %arg13[%c1_96, %c0_97, %c0_98], %350 {strides = array<i32>} : memref<2x8x256xf32, #tpu.memory_space<vmem>>, vector<1x8x256xf32>,
    return
  }
  func.func @transform_0(%arg0: i32) -> (i32, i32) {
    %c0_i32 = arith.constant 0 : i32
    %c0_i32_0 = arith.constant 0 : i32
    %c0_i32_1 = arith.constant 0 : i32
    return %c0_i32, %c0_i32_0 : i32, i32
  }
  func.func @transform_1(%arg0: i32) -> (i32, i32, i32) {
    %c0_i32 = arith.constant 0 : i32
    %c0_i32_0 = arith.constant 0 : i32
    %c0_i32_1 = arith.constant 0 : i32
    return %arg0, %c0_i32, %c0_i32_0 : i32, i32, i32
  }
  func.func @transform_2(%arg0: i32) -> (i32, i32) {
    %c0_i32 = arith.constant 0 : i32
    %c0_i32_0 = arith.constant 0 : i32
    %c0_i32_1 = arith.constant 0 : i32
    return %c0_i32, %c0_i32_0 : i32, i32
  }
  func.func @transform_3(%arg0: i32) -> (i32, i32) {
    %c0_i32 = arith.constant 0 : i32
    %c0_i32_0 = arith.constant 0 : i32
    %c0_i32_1 = arith.constant 0 : i32
    return %c0_i32, %c0_i32_0 : i32, i32
  }
  func.func @transform_4(%arg0: i32) -> (i32, i32) {
    %c0_i32 = arith.constant 0 : i32
    %c0_i32_0 = arith.constant 0 : i32
    %c0_i32_1 = arith.constant 0 : i32
    return %c0_i32, %c0_i32_0 : i32, i32
  }
  func.func @transform_5(%arg0: i32) -> (i32, i32) {
    %c0_i32 = arith.constant 0 : i32
    %c0_i32_0 = arith.constant 0 : i32
    %c0_i32_1 = arith.constant 0 : i32
    return %c0_i32, %c0_i32_0 : i32, i32
  }
  func.func @transform_6(%arg0: i32) -> (i32, i32) {
    %c0_i32 = arith.constant 0 : i32
    %c0_i32_0 = arith.constant 0 : i32
    %c0_i32_1 = arith.constant 0 : i32
    return %c0_i32, %c0_i32_0 : i32, i32
  }
  func.func @transform_7(%arg0: i32) -> (i32, i32) {
    %c0_i32 = arith.constant 0 : i32
    %c0_i32_0 = arith.constant 0 : i32
    %c0_i32_1 = arith.constant 0 : i32
    return %c0_i32, %c0_i32_0 : i32, i32
  }
  func.func @transform_8(%arg0: i32) -> (i32, i32) {
    %c0_i32 = arith.constant 0 : i32
    %c0_i32_0 = arith.constant 0 : i32
    %c0_i32_1 = arith.constant 0 : i32
    return %c0_i32, %c0_i32_0 : i32, i32
  }
  func.func @transform_9(%arg0: i32) -> (i32, i32) {
    %c0_i32 = arith.constant 0 : i32
    %c0_i32_0 = arith.constant 0 : i32
    %c0_i32_1 = arith.constant 0 : i32
    return %c0_i32, %c0_i32_0 : i32, i32
  }
  func.func @transform_10(%arg0: i32) -> (i32, i32) {
    %c0_i32 = arith.constant 0 : i32
    %c0_i32_0 = arith.constant 0 : i32
    %c0_i32_1 = arith.constant 0 : i32
    return %c0_i32, %c0_i32_0 : i32, i32
  }
  func.func @transform_11(%arg0: i32) -> (i32, i32) {
    %c0_i32 = arith.constant 0 : i32
    %c0_i32_0 = arith.constant 0 : i32
    %c0_i32_1 = arith.constant 0 : i32
    return %c0_i32, %c0_i32_0 : i32, i32
  }
  func.func @transform_12(%arg0: i32) -> (i32, i32, i32) {
    %c0_i32 = arith.constant 0 : i32
    %c0_i32_0 = arith.constant 0 : i32
    %c0_i32_1 = arith.constant 0 : i32
    return %arg0, %c0_i32, %c0_i32_0 : i32, i32, i32
  }
}

</mosaic_0001>

<llo_original>
// kernel: _forward.1
$region0: #{_forward.1}
  #allocation0 [shape = 'u32[]', space=smem, size = 0x4, offset = 0x4, fixed_abs, tag = 'smem constant byte address 0x4 - core index']
  #allocation1 [shape = 'u32[144,128]{1,0:T(1,128)}', space=vmem, size = 0x12000, scoped, tag = 'internal scratch']
  %s0 = inlined_call_operand.vmem [shape: f32[9,256], index: 0, kind: input, shape index: {}]
  %s1 = inlined_call_operand.vmem [shape: f32[4,8,256], index: 1, kind: input, shape index: {}]
  %s2 = inlined_call_operand.vmem [shape: bf16[16,72], index: 2, kind: input, shape index: {}]
  %s3 = inlined_call_operand.vmem [shape: f32[16,1], index: 3, kind: input, shape index: {}]
  %s4 = inlined_call_operand.vmem [shape: f32[8,256], index: 4, kind: input, shape index: {}]
  %s5 = inlined_call_operand.vmem [shape: f32[8,256], index: 5, kind: input, shape index: {}]
  %s6 = inlined_call_operand.vmem [shape: bf16[8,72], index: 6, kind: input, shape index: {}]
  %s7 = inlined_call_operand.vmem [shape: f32[8,1], index: 7, kind: input, shape index: {}]
  %s8 = inlined_call_operand.vmem [shape: f32[8,256], index: 8, kind: input, shape index: {}]
  %s9 = inlined_call_operand.vmem [shape: f32[8,256], index: 9, kind: input, shape index: {}]
  %s10 = inlined_call_operand.vmem [shape: f32[8,256], index: 10, kind: input, shape index: {}]
  %s11 = inlined_call_operand.vmem [shape: f32[8,256], index: 11, kind: input, shape index: {}]
  %s12 = inlined_call_operand.vmem [shape: f32[4,8,256], index: 12, kind: output, shape index: {}]
  %s13 = sld [smem:[#allocation0]]
  $region81: #{_forward.1} parent=0
    _
  %s15 = ssub.s32 1, %s13
  %s16 = scalar_select 0, %s15, %s13
  loop: start=0, step=1, limit=4
  $region2: #{_forward.1} parent=0 // loop_pre_header
    _
  $region3: #{_forward.1} parent=0 // loop_header
    %s18 = sphi 0, %s22
    %p19 = scmp.ge.s32.totalorder %s18, 4
    %s26 = sphi 0, %s26
    %s28 = sphi 0, %s26
    %s29 = sphi 0, %s28
    %s43 = sphi 0, %s29
    %s49 = sphi 0, %s51
    %s52 = sphi 0, %s49
    %s53 = sphi 0, %s52
    %s69 = sphi 0, %s53
    %s73 = sphi 0, %s73
    %s75 = sphi 0, %s73
    %s76 = sphi 0, %s75
    %s90 = sphi 0, %s76
    %s94 = sphi 0, %s94
    %s96 = sphi 0, %s94
    %s97 = sphi 0, %s96
    %s111 = sphi 0, %s97
    %s115 = sphi 0, %s115
    %s117 = sphi 0, %s115
    %s118 = sphi 0, %s117
    %s132 = sphi 0, %s118
    %s136 = sphi 0, %s136
    %s138 = sphi 0, %s136
    %s139 = sphi 0, %s138
    %s153 = sphi 0, %s139
    %s157 = sphi 0, %s157
    %s159 = sphi 0, %s157
    %s160 = sphi 0, %s159
    %s174 = sphi 0, %s160
    %s178 = sphi 0, %s178
    %s180 = sphi 0, %s178
    %s181 = sphi 0, %s180
    %s195 = sphi 0, %s181
    %s199 = sphi 0, %s199
    %s201 = sphi 0, %s199
    %s202 = sphi 0, %s201
    %s216 = sphi 0, %s202
    %s220 = sphi 0, %s220
    %s222 = sphi 0, %s220
    %s223 = sphi 0, %s222
    %s237 = sphi 0, %s223
    %s241 = sphi 0, %s241
    %s243 = sphi 0, %s241
    %s244 = sphi 0, %s243
    %s258 = sphi 0, %s244
    %s262 = sphi 0, %s262
    %s264 = sphi 0, %s262
    %s265 = sphi 0, %s264
    %s279 = sphi 0, %s265
    %s285 = sphi 0, %s287
    %s288 = sphi 0, %s285
    %s289 = sphi 0, %s288
    %s305 = sphi 0, %s289
  $region4: #{_forward.1} parent=0 // loop_header_branch
    %21 = sbr.rel (%p19) target = $region8
  $region5: #{_forward.1} parent=0 // loop_body
    %s23 = ssub.s32 %s18, 1
    %s24 = ssub.s32 %s18, 2
    %s25 = sadd.s32 %s18, 1
    %s27 = sadd.s32 %s26, 1
    %p30 = scmp.eq.s32.totalorder %s18, 1
    %p31 = scmp.ne.s32.totalorder %s26, %s28
    %p32 = scmp.eq.s32.totalorder %s18, 0
    %p33 = por %p31, %p32
    %p34 = scmp.ne.s32.totalorder %s26, %s28
    %p35 = scmp.eq.s32.totalorder %s23, 1
    %p36 = por %p34, %p35
    %p37 = scmp.ne.s32.totalorder %s28, %s29
    %p38 = scmp.eq.s32.totalorder %s23, 0
    %p39 = por %p37, %p38
    %p40 = scmp.ne.s32.totalorder %s28, %s29
    %p41 = scmp.eq.s32.totalorder %s24, 1
    %p42 = por %p40, %p41
    %p44 = scmp.ne.s32.totalorder %s29, %s43
    %p45 = scmp.eq.s32.totalorder %s24, 0
    %p46 = por %p44, %p45
    %s47 = ssub.s32 %s18, %s25
    %p48 = scmp.eq.s32.totalorder %s47, 0
    %s50 = sadd.s32 %s49, 1
    %s51 = scalar_select %p48, %s49, %s50
    %p54 = pneg %p48
    %p55 = scmp.eq.s32.totalorder %s18, 1
    %p56 = por %p54, %p55
    %p57 = scmp.ne.s32.totalorder %s49, %s52
    %p58 = scmp.eq.s32.totalorder %s18, 0
    %p59 = por %p57, %p58
    %p60 = scmp.ne.s32.totalorder %s49, %s52
    %p61 = scmp.eq.s32.totalorder %s23, 1
    %p62 = por %p60, %p61
    %p63 = scmp.ne.s32.totalorder %s52, %s53
    %p64 = scmp.eq.s32.totalorder %s23, 0
    %p65 = por %p63, %p64
    %p66 = scmp.ne.s32.totalorder %s52, %s53
    %p67 = scmp.eq.s32.totalorder %s24, 1
    %p68 = por %p66, %p67
    %p70 = scmp.ne.s32.totalorder %s53, %s69
    %p71 = scmp.eq.s32.totalorder %s24, 0
    %p72 = por %p70, %p71
    %s74 = sadd.s32 %s73, 1
    %p77 = scmp.eq.s32.totalorder %s18, 1
    %p78 = scmp.ne.s32.totalorder %s73, %s75
    %p79 = scmp.eq.s32.totalorder %s18, 0
    %p80 = por %p78, %p79
    %p81 = scmp.ne.s32.totalorder %s73, %s75
    %p82 = scmp.eq.s32.totalorder %s23, 1
    %p83 = por %p81, %p82
    %p84 = scmp.ne.s32.totalorder %s75, %s76
    %p85 = scmp.eq.s32.totalorder %s23, 0
    %p86 = por %p84, %p85
    %p87 = scmp.ne.s32.totalorder %s75, %s76
    %p88 = scmp.eq.s32.totalorder %s24, 1
    %p89 = por %p87, %p88
    %p91 = scmp.ne.s32.totalorder %s76, %s90
    %p92 = scmp.eq.s32.totalorder %s24, 0
    %p93 = por %p91, %p92
    %s95 = sadd.s32 %s94, 1
    %p98 = scmp.eq.s32.totalorder %s18, 1
    %p99 = scmp.ne.s32.totalorder %s94, %s96
    %p100 = scmp.eq.s32.totalorder %s18, 0
    %p101 = por %p99, %p100
    %p102 = scmp.ne.s32.totalorder %s94, %s96
    %p103 = scmp.eq.s32.totalorder %s23, 1
    %p104 = por %p102, %p103
    %p105 = scmp.ne.s32.totalorder %s96, %s97
    %p106 = scmp.eq.s32.totalorder %s23, 0
    %p107 = por %p105, %p106
    %p108 = scmp.ne.s32.totalorder %s96, %s97
    %p109 = scmp.eq.s32.totalorder %s24, 1
    %p110 = por %p108, %p109
    %p112 = scmp.ne.s32.totalorder %s97, %s111
    %p113 = scmp.eq.s32.totalorder %s24, 0
    %p114 = por %p112, %p113
    %s116 = sadd.s32 %s115, 1
    %p119 = scmp.eq.s32.totalorder %s18, 1
    %p120 = scmp.ne.s32.totalorder %s115, %s117
    %p121 = scmp.eq.s32.totalorder %s18, 0
    %p122 = por %p120, %p121
    %p123 = scmp.ne.s32.totalorder %s115, %s117
    %p124 = scmp.eq.s32.totalorder %s23, 1
    %p125 = por %p123, %p124
    %p126 = scmp.ne.s32.totalorder %s117, %s118
    %p127 = scmp.eq.s32.totalorder %s23, 0
    %p128 = por %p126, %p127
    %p129 = scmp.ne.s32.totalorder %s117, %s118
    %p130 = scmp.eq.s32.totalorder %s24, 1
    %p131 = por %p129, %p130
    %p133 = scmp.ne.s32.totalorder %s118, %s132
    %p134 = scmp.eq.s32.totalorder %s24, 0
    %p135 = por %p133, %p134
    %s137 = sadd.s32 %s136, 1
    %p140 = scmp.eq.s32.totalorder %s18, 1
    %p141 = scmp.ne.s32.totalorder %s136, %s138
    %p142 = scmp.eq.s32.totalorder %s18, 0
    %p143 = por %p141, %p142
    %p144 = scmp.ne.s32.totalorder %s136, %s138
    %p145 = scmp.eq.s32.totalorder %s23, 1
    %p146 = por %p144, %p145
    %p147 = scmp.ne.s32.totalorder %s138, %s139
    %p148 = scmp.eq.s32.totalorder %s23, 0
    %p149 = por %p147, %p148
    %p150 = scmp.ne.s32.totalorder %s138, %s139
    %p151 = scmp.eq.s32.totalorder %s24, 1
    %p152 = por %p150, %p151
    %p154 = scmp.ne.s32.totalorder %s139, %s153
    %p155 = scmp.eq.s32.totalorder %s24, 0
    %p156 = por %p154, %p155
    %s158 = sadd.s32 %s157, 1
    %p161 = scmp.eq.s32.totalorder %s18, 1
    %p162 = scmp.ne.s32.totalorder %s157, %s159
    %p163 = scmp.eq.s32.totalorder %s18, 0
    %p164 = por %p162, %p163
    %p165 = scmp.ne.s32.totalorder %s157, %s159
    %p166 = scmp.eq.s32.totalorder %s23, 1
    %p167 = por %p165, %p166
    %p168 = scmp.ne.s32.totalorder %s159, %s160
    %p169 = scmp.eq.s32.totalorder %s23, 0
    %p170 = por %p168, %p169
    %p171 = scmp.ne.s32.totalorder %s159, %s160
    %p172 = scmp.eq.s32.totalorder %s24, 1
    %p173 = por %p171, %p172
    %p175 = scmp.ne.s32.totalorder %s160, %s174
    %p176 = scmp.eq.s32.totalorder %s24, 0
    %p177 = por %p175, %p176
    %s179 = sadd.s32 %s178, 1
    %p182 = scmp.eq.s32.totalorder %s18, 1
    %p183 = scmp.ne.s32.totalorder %s178, %s180
    %p184 = scmp.eq.s32.totalorder %s18, 0
    %p185 = por %p183, %p184
    %p186 = scmp.ne.s32.totalorder %s178, %s180
    %p187 = scmp.eq.s32.totalorder %s23, 1
    %p188 = por %p186, %p187
    %p189 = scmp.ne.s32.totalorder %s180, %s181
    %p190 = scmp.eq.s32.totalorder %s23, 0
    %p191 = por %p189, %p190
    %p192 = scmp.ne.s32.totalorder %s180, %s181
    %p193 = scmp.eq.s32.totalorder %s24, 1
    %p194 = por %p192, %p193
    %p196 = scmp.ne.s32.totalorder %s181, %s195
    %p197 = scmp.eq.s32.totalorder %s24, 0
    %p198 = por %p196, %p197
    %s200 = sadd.s32 %s199, 1
    %p203 = scmp.eq.s32.totalorder %s18, 1
    %p204 = scmp.ne.s32.totalorder %s199, %s201
    %p205 = scmp.eq.s32.totalorder %s18, 0
    %p206 = por %p204, %p205
    %p207 = scmp.ne.s32.totalorder %s199, %s201
    %p208 = scmp.eq.s32.totalorder %s23, 1
    %p209 = por %p207, %p208
    %p210 = scmp.ne.s32.totalorder %s201, %s202
    %p211 = scmp.eq.s32.totalorder %s23, 0
    %p212 = por %p210, %p211
    %p213 = scmp.ne.s32.totalorder %s201, %s202
    %p214 = scmp.eq.s32.totalorder %s24, 1
    %p215 = por %p213, %p214
    %p217 = scmp.ne.s32.totalorder %s202, %s216
    %p218 = scmp.eq.s32.totalorder %s24, 0
    %p219 = por %p217, %p218
    %s221 = sadd.s32 %s220, 1
    %p224 = scmp.eq.s32.totalorder %s18, 1
    %p225 = scmp.ne.s32.totalorder %s220, %s222
    %p226 = scmp.eq.s32.totalorder %s18, 0
    %p227 = por %p225, %p226
    %p228 = scmp.ne.s32.totalorder %s220, %s222
    %p229 = scmp.eq.s32.totalorder %s23, 1
    %p230 = por %p228, %p229
    %p231 = scmp.ne.s32.totalorder %s222, %s223
    %p232 = scmp.eq.s32.totalorder %s23, 0
    %p233 = por %p231, %p232
    %p234 = scmp.ne.s32.totalorder %s222, %s223
    %p235 = scmp.eq.s32.totalorder %s24, 1
    %p236 = por %p234, %p235
    %p238 = scmp.ne.s32.totalorder %s223, %s237
    %p239 = scmp.eq.s32.totalorder %s24, 0
    %p240 = por %p238, %p239
    %s242 = sadd.s32 %s241, 1
    %p245 = scmp.eq.s32.totalorder %s18, 1
    %p246 = scmp.ne.s32.totalorder %s241, %s243
    %p247 = scmp.eq.s32.totalorder %s18, 0
    %p248 = por %p246, %p247
    %p249 = scmp.ne.s32.totalorder %s241, %s243
    %p250 = scmp.eq.s32.totalorder %s23, 1
    %p251 = por %p249, %p250
    %p252 = scmp.ne.s32.totalorder %s243, %s244
    %p253 = scmp.eq.s32.totalorder %s23, 0
    %p254 = por %p252, %p253
    %p255 = scmp.ne.s32.totalorder %s243, %s244
    %p256 = scmp.eq.s32.totalorder %s24, 1
    %p257 = por %p255, %p256
    %p259 = scmp.ne.s32.totalorder %s244, %s258
    %p260 = scmp.eq.s32.totalorder %s24, 0
    %p261 = por %p259, %p260
    %s263 = sadd.s32 %s262, 1
    %p266 = scmp.eq.s32.totalorder %s18, 1
    %p267 = scmp.ne.s32.totalorder %s262, %s264
    %p268 = scmp.eq.s32.totalorder %s18, 0
    %p269 = por %p267, %p268
    %p270 = scmp.ne.s32.totalorder %s262, %s264
    %p271 = scmp.eq.s32.totalorder %s23, 1
    %p272 = por %p270, %p271
    %p273 = scmp.ne.s32.totalorder %s264, %s265
    %p274 = scmp.eq.s32.totalorder %s23, 0
    %p275 = por %p273, %p274
    %p276 = scmp.ne.s32.totalorder %s264, %s265
    %p277 = scmp.eq.s32.totalorder %s24, 1
    %p278 = por %p276, %p277
    %p280 = scmp.ne.s32.totalorder %s265, %s279
    %p281 = scmp.eq.s32.totalorder %s24, 0
    %p282 = por %p280, %p281
    %s283 = ssub.s32 %s18, %s25
    %p284 = scmp.eq.s32.totalorder %s283, 0
    %s286 = sadd.s32 %s285, 1
    %s287 = scalar_select %p284, %s285, %s286
    %p290 = pneg %p284
    %p291 = scmp.eq.s32.totalorder %s18, 1
    %p292 = por %p290, %p291
    %p293 = scmp.ne.s32.totalorder %s285, %s288
    %p294 = scmp.eq.s32.totalorder %s18, 0
    %p295 = por %p293, %p294
    %p296 = scmp.ne.s32.totalorder %s285, %s288
    %p297 = scmp.eq.s32.totalorder %s23, 1
    %p298 = por %p296, %p297
    %p299 = scmp.ne.s32.totalorder %s288, %s289
    %p300 = scmp.eq.s32.totalorder %s23, 0
    %p301 = por %p299, %p300
    %p302 = scmp.ne.s32.totalorder %s288, %s289
    %p303 = scmp.eq.s32.totalorder %s24, 1
    %p304 = por %p302, %p303
    %p306 = scmp.ne.s32.totalorder %s289, %s305
    %p307 = scmp.eq.s32.totalorder %s24, 0
    %p308 = por %p306, %p307
    %p309 = scmp.le.s32.totalorder 1, %s18
    %p310 = scmp.lt.s32.totalorder %s18, 3
    %p311 = pnand %p309, %p310
    %p312 = pneg %p311
    // Predicated region
    $region9: #{_forward.1} parent=5 // pred_check
      _
    $region10: #{_forward.1} parent=5 // pred_check_branch
      %314 = sbr.rel (%p311) target = $region12
    $region11: #{_forward.1} parent=5 // pred_region
      %s315 = ssub.s32 %s18, 1
      // Predicated region
      $region13: #{_forward.1} parent=11 // pred_check
        %p316 = pneg %p39
      $region14: #{_forward.1} parent=11 // pred_check_branch
        %318 = sbr.rel (%p316) target = $region16
      $region15: #{_forward.1} parent=11 // pred_region
        _
      $region16: #{_forward.1} parent=11 // pred_fallthru
        _
      // Predicated region
      $region17: #{_forward.1} parent=11 // pred_check
        %p319 = pneg %p86
      $region18: #{_forward.1} parent=11 // pred_check_branch
        %321 = sbr.rel (%p319) target = $region20
      $region19: #{_forward.1} parent=11 // pred_region
        _
      $region20: #{_forward.1} parent=11 // pred_fallthru
        _
      // Predicated region
      $region21: #{_forward.1} parent=11 // pred_check
        %p322 = pneg %p107
      $region22: #{_forward.1} parent=11 // pred_check_branch
        %324 = sbr.rel (%p322) target = $region24
      $region23: #{_forward.1} parent=11 // pred_region
        _
      $region24: #{_forward.1} parent=11 // pred_fallthru
        _
      // Predicated region
      $region25: #{_forward.1} parent=11 // pred_check
        %p325 = pneg %p128
      $region26: #{_forward.1} parent=11 // pred_check_branch
        %327 = sbr.rel (%p325) target = $region28
      $region27: #{_forward.1} parent=11 // pred_region
        _
      $region28: #{_forward.1} parent=11 // pred_fallthru
        _
      // Predicated region
      $region29: #{_forward.1} parent=11 // pred_check
        %p328 = pneg %p149
      $region30: #{_forward.1} parent=11 // pred_check_branch
        %330 = sbr.rel (%p328) target = $region32
      $region31: #{_forward.1} parent=11 // pred_region
        _
      $region32: #{_forward.1} parent=11 // pred_fallthru
        _
      // Predicated region
      $region33: #{_forward.1} parent=11 // pred_check
        %p331 = pneg %p170
      $region34: #{_forward.1} parent=11 // pred_check_branch
        %333 = sbr.rel (%p331) target = $region36
      $region35: #{_forward.1} parent=11 // pred_region
        _
      $region36: #{_forward.1} parent=11 // pred_fallthru
        _
      // Predicated region
      $region37: #{_forward.1} parent=11 // pred_check
        %p334 = pneg %p191
      $region38: #{_forward.1} parent=11 // pred_check_branch
        %336 = sbr.rel (%p334) target = $region40
      $region39: #{_forward.1} parent=11 // pred_region
        _
      $region40: #{_forward.1} parent=11 // pred_fallthru
        _
      // Predicated region
      $region41: #{_forward.1} parent=11 // pred_check
        %p337 = pneg %p212
      $region42: #{_forward.1} parent=11 // pred_check_branch
        %339 = sbr.rel (%p337) target = $region44
      $region43: #{_forward.1} parent=11 // pred_region
        _
      $region44: #{_forward.1} parent=11 // pred_fallthru
        _
      // Predicated region
      $region45: #{_forward.1} parent=11 // pred_check
        %p340 = pneg %p233
      $region46: #{_forward.1} parent=11 // pred_check_branch
        %342 = sbr.rel (%p340) target = $region48
      $region47: #{_forward.1} parent=11 // pred_region
        _
      $region48: #{_forward.1} parent=11 // pred_fallthru
        _
      // Predicated region
      $region49: #{_forward.1} parent=11 // pred_check
        %p343 = pneg %p254
      $region50: #{_forward.1} parent=11 // pred_check_branch
        %345 = sbr.rel (%p343) target = $region52
      $region51: #{_forward.1} parent=11 // pred_region
        _
      $region52: #{_forward.1} parent=11 // pred_fallthru
        _
      // Predicated region
      $region53: #{_forward.1} parent=11 // pred_check
        %p346 = pneg %p275
      $region54: #{_forward.1} parent=11 // pred_check_branch
        %348 = sbr.rel (%p346) target = $region56
      $region55: #{_forward.1} parent=11 // pred_region
        _
      $region56: #{_forward.1} parent=11 // pred_fallthru
        _
    $region12: #{_forward.1} parent=5 // pred_fallthru
      _
    %p349 = scmp.lt.s32.totalorder %s18, 2
    // Predicated region
    $region57: #{_forward.1} parent=5 // pred_check
      %p350 = pneg %p349
    $region58: #{_forward.1} parent=5 // pred_check_branch
      %352 = sbr.rel (%p350) target = $region60
    $region59: #{_forward.1} parent=5 // pred_region
      // Predicated region
      $region61: #{_forward.1} parent=59 // pred_check
        %p353 = pneg %p59
      $region62: #{_forward.1} parent=59 // pred_check_branch
        %355 = sbr.rel (%p353) target = $region64
      $region63: #{_forward.1} parent=59 // pred_region
        %s356 = smul.u32 2, %s18
        %p357 = scmp.lt.s32.totalorder %s356, 3
        %s358 = scalar_select %p357, %s356, 3
        %s359 = smul.addr %s358, 2
        %s360 = smul.addr %s359, 8
        %s361 = scalar_lea.vmem %s1, %s360
        %s362 = smul.u32 2, %s18
      $region64: #{_forward.1} parent=59 // pred_fallthru
        _
    $region60: #{_forward.1} parent=5 // pred_fallthru
      _
    %p363 = scmp.le.s32.totalorder 1, %s18
    %p364 = scmp.lt.s32.totalorder %s18, 3
    %p365 = pnand %p363, %p364
    %p366 = pneg %p365
    // Predicated region
    $region65: #{_forward.1} parent=5 // pred_check
      _
    $region66: #{_forward.1} parent=5 // pred_check_branch
      %368 = sbr.rel (%p365) target = $region68
    $region67: #{_forward.1} parent=5 // pred_region
      %s369 = ssub.s32 %s18, 1
      %p370 = pneg %p39
      %p371 = pneg %p36
      %s372 = smul.u32 2, %s23
      %p373 = scmp.lt.s32.totalorder %s372, 3
      %s374 = scalar_select %p373, %s372, 3
      %s375 = smul.addr %s374, 2
      %s376 = smul.addr %s375, 8
      %s377 = scalar_lea.vmem %s1, %s376
      %p378 = pneg %p65
      %p379 = pneg %p62
      %p380 = pneg %p86
      %p381 = pneg %p83
      %p382 = pneg %p107
      %p383 = pneg %p104
      %p384 = pneg %p128
      %p385 = pneg %p125
      %p386 = pneg %p149
      %p387 = pneg %p146
      %p388 = pneg %p170
      %p389 = pneg %p167
      %p390 = pneg %p191
      %p391 = pneg %p188
      %p392 = pneg %p212
      %p393 = pneg %p209
      %p394 = pneg %p233
      %p395 = pneg %p230
      %p396 = pneg %p254
      %p397 = pneg %p251
      %p398 = pneg %p275
      %p399 = pneg %p272
      %p400 = pneg %p301
      %p401 = pneg %p298
      %s402 = smul.u32 2, %s23
      %p403 = scmp.lt.s32.totalorder %s402, 3
      %s404 = scalar_select %p403, %s402, 3
      %s405 = smul.addr %s404, 2
      %s406 = smul.addr %s405, 8
      %s407 = scalar_lea.vmem %s12, %s406
      %s408 = smul.u32 2, %s23
      %p409 = scmp.lt.s32.totalorder %s408, 3
      %s410 = scalar_select %p409, %s408, 3
      %s411 = smul.addr %s410, 2
      %s412 = smul.addr %s411, 8
      %s413 = scalar_lea.vmem %s1, %s412
      %s414 = smul.u32 2, %s23
      %s415 = smul.u32 2, %s23
      %p416 = scmp.lt.s32.totalorder %s415, 3
      %s417 = scalar_select %p416, %s415, 3
      %s418 = smul.addr %s417, 2
      %s419 = smul.addr %s418, 8
      %s420 = scalar_lea.vmem %s12, %s419
      %s421 = smul.u32 2, %s23
      %v423 = vld [vmem:[%s0] sm:$0xff]
      %v424 = vld [vmem:[%s0 + $0x8] sm:$0xff]
      %v425 = vld [vmem:[%s0 + $0x10] sm:$0x1]
      %v426 = vld [vmem:[%s0 + $0x18] sm:$0x1]
      %v427 = vld [vmem:[%s2] sm:$0xf]
      %v428 = vld [vmem:[%s2 + $0x4] sm:$0xf]
      %v429 = vld [vmem:[%s3] sm:$0xff]
      %v430 = vld [vmem:[%s3 + $0x8] sm:$0xff]
      %v431 = vld [vmem:[%s6] sm:$0xf]
      %v432 = vld [vmem:[%s7] sm:$0xff]
      %v433 = vld [vmem:[%s4] sm:$0xff]
      %v434 = vld [vmem:[%s4 + $0x8] sm:$0xff]
      %v435 = vld [vmem:[%s5] sm:$0xff]
      %v436 = vld [vmem:[%s5 + $0x8] sm:$0xff]
      %v437 = vld [vmem:[%s8] sm:$0xff]
      %v438 = vld [vmem:[%s8 + $0x8] sm:$0xff]
      %v439 = vld [vmem:[%s9] sm:$0xff]
      %v440 = vld [vmem:[%s9 + $0x8] sm:$0xff]
      %v441 = vld [vmem:[%s10] sm:$0xff]
      %v442 = vld [vmem:[%s10 + $0x8] sm:$0xff]
      %v443 = vld [vmem:[%s11] sm:$0xff]
      %v444 = vld [vmem:[%s11 + $0x8] sm:$0xff]
      %v445 = vld [vmem:[%s413] sm:$0xff]
      %v446 = vld [vmem:[%s413 + $0x8] sm:$0xff]
      %447 = vrot.lane.b32.xlu0 %v445, 17
      %v448 = vpop.permute.xlu0 %447
      %449 = vrot.lane.b32.xlu0 %v446, 17
      %v450 = vpop.permute.xlu0 %449
      %v451 = vlaneseq
      %v452 = vand.u32 %v451, 127
      %vm453 = vcmp.lt.s32.totalorder %v452, 17
      %v454 = vsel %vm453, %v448, %v450
      %v455 = vsel %vm453, %v450, %v448
      %v456 = vlaneseq
      %v457 = vshrl.u32 %v456, 7
      %v458 = vsub.s32 0, %v457
      %v459 = vrot.slane %v423, %v458
      %v460 = vlaneseq
      %v461 = vshrl.u32 %v460, 7
      %v462 = vsub.s32 0, %v461
      %v463 = vrot.slane %v424, %v462
      %v464 = vmul.f32 %v455, %v459
      %v465 = vmul.f32 %v454, %v463
      %466 = vrot.lane.b32.xlu0 %v445, 16
      %v467 = vpop.permute.xlu0 %466
      %468 = vrot.lane.b32.xlu0 %v446, 16
      %v469 = vpop.permute.xlu0 %468
      %vm470 = vcmp.lt.s32.totalorder %v452, 16
      %v471 = vsel %vm470, %v467, %v469
      %v472 = vsel %vm470, %v469, %v467
      %v473 = vlaneseq
      %v474 = vshrl.u32 %v473, 7
      %v475 = vsub.s32 1, %v474
      %v476 = vrot.slane %v423, %v475
      %v477 = vlaneseq
      %v478 = vshrl.u32 %v477, 7
      %v479 = vsub.s32 1, %v478
      %v480 = vrot.slane %v424, %v479
      %v481 = vmul.f32 %v472, %v476
      %v482 = vmul.f32 %v471, %v480
      %483 = vrot.lane.b32.xlu0 %v445, 15
      %v484 = vpop.permute.xlu0 %483
      %485 = vrot.lane.b32.xlu0 %v446, 15
      %v486 = vpop.permute.xlu0 %485
      %vm487 = vcmp.lt.s32.totalorder %v452, 15
      %v488 = vsel %vm487, %v484, %v486
      %v489 = vsel %vm487, %v486, %v484
      %v490 = vlaneseq
      %v491 = vshrl.u32 %v490, 7
      %v492 = vsub.s32 2, %v491
      %v493 = vrot.slane %v423, %v492
      %v494 = vlaneseq
      %v495 = vshrl.u32 %v494, 7
      %v496 = vsub.s32 2, %v495
      %v497 = vrot.slane %v424, %v496
      %v498 = vmul.f32 %v489, %v493
      %v499 = vmul.f32 %v488, %v497
      %500 = vrot.lane.b32.xlu0 %v445, 1
      %v501 = vpop.permute.xlu0 %500
      %502 = vrot.lane.b32.xlu0 %v446, 1
      %v503 = vpop.permute.xlu0 %502
      %vm504 = vcmp.lt.s32.totalorder %v452, 1
      %v505 = vsel %vm504, %v501, %v503
      %v506 = vsel %vm504, %v503, %v501
      %v507 = vlaneseq
      %v508 = vshrl.u32 %v507, 7
      %v509 = vsub.s32 3, %v508
      %v510 = vrot.slane %v423, %v509
      %v511 = vlaneseq
      %v512 = vshrl.u32 %v511, 7
      %v513 = vsub.s32 3, %v512
      %v514 = vrot.slane %v424, %v513
      %v515 = vmul.f32 %v506, %v510
      %v516 = vmul.f32 %v505, %v514
      %517 = vrot.lane.b32.xlu0 %v445, 127
      %v518 = vpop.permute.xlu0 %517
      %519 = vrot.lane.b32.xlu0 %v446, 127
      %v520 = vpop.permute.xlu0 %519
      %vm521 = vcmp.lt.s32.totalorder %v452, 127
      %v522 = vsel %vm521, %v518, %v520
      %v523 = vsel %vm521, %v520, %v518
      %v524 = vlaneseq
      %v525 = vshrl.u32 %v524, 7
      %v526 = vsub.s32 5, %v525
      %v527 = vrot.slane %v423, %v526
      %v528 = vlaneseq
      %v529 = vshrl.u32 %v528, 7
      %v530 = vsub.s32 5, %v529
      %v531 = vrot.slane %v424, %v530
      %v532 = vmul.f32 %v522, %v527
      %v533 = vmul.f32 %v523, %v531
      %534 = vrot.lane.b32.xlu0 %v445, 113
      %v535 = vpop.permute.xlu0 %534
      %536 = vrot.lane.b32.xlu0 %v446, 113
      %v537 = vpop.permute.xlu0 %536
      %vm538 = vcmp.lt.s32.totalorder %v452, 113
      %v539 = vsel %vm538, %v535, %v537
      %v540 = vsel %vm538, %v537, %v535
      %v541 = vlaneseq
      %v542 = vshrl.u32 %v541, 7
      %v543 = vsub.s32 6, %v542
      %v544 = vrot.slane %v423, %v543
      %v545 = vlaneseq
      %v546 = vshrl.u32 %v545, 7
      %v547 = vsub.s32 6, %v546
      %v548 = vrot.slane %v424, %v547
      %v549 = vmul.f32 %v539, %v544
      %v550 = vmul.f32 %v540, %v548
      %551 = vrot.lane.b32.xlu0 %v445, 112
      %v552 = vpop.permute.xlu0 %551
      %553 = vrot.lane.b32.xlu0 %v446, 112
      %v554 = vpop.permute.xlu0 %553
      %vm555 = vcmp.lt.s32.totalorder %v452, 112
      %v556 = vsel %vm555, %v552, %v554
      %v557 = vsel %vm555, %v554, %v552
      %v558 = vlaneseq
      %v559 = vshrl.u32 %v558, 7
      %v560 = vsub.s32 7, %v559
      %v561 = vrot.slane %v423, %v560
      %v562 = vlaneseq
      %v563 = vshrl.u32 %v562, 7
      %v564 = vsub.s32 7, %v563
      %v565 = vrot.slane %v424, %v564
      %v566 = vmul.f32 %v556, %v561
      %v567 = vmul.f32 %v557, %v565
      %568 = vrot.lane.b32.xlu0 %v445, 111
      %v569 = vpop.permute.xlu0 %568
      %570 = vrot.lane.b32.xlu0 %v446, 111
      %v571 = vpop.permute.xlu0 %570
      %vm572 = vcmp.lt.s32.totalorder %v452, 111
      %v573 = vsel %vm572, %v569, %v571
      %v574 = vsel %vm572, %v571, %v569
      %v575 = vlaneseq
      %v576 = vshrl.u32 %v575, 7
      %v577 = vsub.s32 0, %v576
      %v578 = vrot.slane %v425, %v577
      %v579 = vlaneseq
      %v580 = vshrl.u32 %v579, 7
      %v581 = vsub.s32 0, %v580
      %v582 = vrot.slane %v426, %v581
      %v583 = vmul.f32 %v573, %v578
      %v584 = vmul.f32 %v574, %v582
      %v585 = vpack.c.bf16 %v481, %v464
      %v586 = vpack.c.bf16 %v482, %v465
      %v587 = vpack.c.bf16 %v515, %v498
      %v588 = vpack.c.bf16 %v516, %v499
      %v589 = vpack.c.bf16 %v532, %v445
      %v590 = vpack.c.bf16 %v533, %v446
      %v591 = vpack.c.bf16 %v566, %v549
      %v592 = vpack.c.bf16 %v567, %v550
      %v593 = vpack.c.bf16 %v583, %v583
      %v594 = vpack.c.bf16 %v584, %v584
      %596 = vset.pattern.permute.xlu0 0
      %597 = vperm.xlu0 %596, %v429
      %v598 = vpop.permute.xlu0 %597
      %601 = vset.pattern.permute.xlu0 0
      %602 = vperm.xlu0 %601, %v430
      %v603 = vpop.permute.xlu0 %602
      %v607 = vunpack.c.l.b16 %v427
      %v608 = vunpack.c.l.b16 %v428
      %v609 = vpack.c.b16 %v608, %v607
      %vm610 = vcmask 588800
      %v612 = vsel %vm610, %v609, 0
      %vm614 = vcmask 1043456
      %v616 = vsel %vm614, %v593, 0
      %v619 = vsel %vm614, %v594, 0
      %621 = vmatprep.subr.bf16.mxu0 %v586
      %622 = vmatpush1.bf16.msra.mxu0 %v585
      %623 = vmatprep.subr.bf16.mxu0 %v588
      %624 = vmatpush1.bf16.msra.mxu0 %v587
      %625 = vmatprep.subr.bf16.mxu0 %v590
      %626 = vmatpush1.bf16.msra.mxu0 %v589
      %627 = vmatprep.subr.bf16.mxu0 %v592
      %628 = vmatpush1.bf16.msra.mxu0 %v591
      %629 = vmatprep.subr.bf16.mxu0 %v619
      %630 = vmatpush1.bf16.msra.mxu0 %v616
      %631 = vmatprep.subr.bf16.mxu0 0
      %632 = vmatpush1.bf16.msra.mxu0 0
      %633 = vmatprep.subr.bf16.mxu0 0
      %634 = vmatpush1.bf16.msra.mxu0 0
      %635 = vmatprep.subr.bf16.mxu0 0
      %636 = vmatpush1.bf16.msra.mxu0 0
      %637 = vmatprep.subr.bf16.mxu0 0
      %638 = vmatpush1.bf16.msra.mxu0 0
      %639 = vmatprep.subr.bf16.mxu0 0
      %640 = vmatpush1.bf16.msra.mxu0 0
      %641 = vmatprep.subr.bf16.mxu0 0
      %642 = vmatpush1.bf16.msra.mxu0 0
      %643 = vmatprep.subr.bf16.mxu0 0
      %644 = vmatpush1.bf16.msra.mxu0 0
      %645 = vmatprep.subr.bf16.mxu0 0
      %646 = vmatpush1.bf16.msra.mxu0 0
      %647 = vmatprep.subr.bf16.mxu0 0
      %648 = vmatpush1.bf16.msra.mxu0 0
      %649 = vmatprep.subr.bf16.mxu0 0
      %650 = vmatpush1.bf16.msra.mxu0 0
      %651 = vmatprep.subr.bf16.mxu0 0
      %652 = vmatpush1.bf16.msra.mxu0 0
      %653 = vmatprep.mubr.bf16.mxu0 0
      %654 = vmatmul.mubr.bf16.gmra.mrb[0].mxu0 %v612
      %v655 = vpop.f32.mrb[0].mxu0
      %v656 = vadd.f32 %v598, %v655
      %v657 = vpop.f32.mrb[0].mxu0
      %v658 = vadd.f32 %v598, %v657
      %v659 = vpop.f32.mrb[0].mxu0
      %v660 = vadd.f32 %v603, %v659
      %v661 = vpop.f32.mrb[0].mxu0
      %v662 = vadd.f32 %v603, %v661
      %663 = vdwg.mxu0
      %v664 = vadd.f32 %v660, %v662
      %665 = vadd.xlane.f32.xlu0 %v664
      %v666 = vpop.xlane.xlu0 %665
      %v667 = vrot.slane %v666, 4
      %v668 = vadd.f32 %v666, %v667
      %v669 = vrot.slane %v668, 2
      %v670 = vadd.f32 %v668, %v669
      %v671 = vrot.slane %v670, 1
      %v672 = vadd.f32 %v670, %v671
      %s673 = vtos %v672
      %v674 = vstv %s673
      %v675 = vmul.f32 %v674, 0.00048828125
      %v676 = vmul.f32 %v660, %v660
      %v677 = vmul.f32 %v662, %v662
      %v678 = vadd.f32 %v676, %v677
      %679 = vadd.xlane.f32.xlu0 %v678
      %v680 = vpop.xlane.xlu0 %679
      %v681 = vrot.slane %v680, 4
      %v682 = vadd.f32 %v680, %v681
      %v683 = vrot.slane %v682, 2
      %v684 = vadd.f32 %v682, %v683
      %v685 = vrot.slane %v684, 1
      %v686 = vadd.f32 %v684, %v685
      %s687 = vtos %v686
      %v688 = vstv %s687
      %v689 = vmul.f32 %v688, 0.00048828125
      %v690 = vmul.f32 %v675, %v675
      %v691 = vsub.f32 %v689, %v690
      %v692 = vmax.f32 %v691, 0.0
      %v693 = vsub.f32 %v660, %v675
      %v694 = vsub.f32 %v662, %v675
      %v695 = vadd.f32 %v692, 1e-05
      %v696 = vrsqrt.pop %v695
      %v697 = vmul.f32 %v693, %v696
      %v698 = vmul.f32 %v694, %v696
      %v699 = vmul.f32 %v697, %v441
      %v700 = vmul.f32 %v698, %v442
      %v701 = vadd.f32 %v699, %v443
      %v702 = vadd.f32 %v700, %v444
      %v703 = vadd.f32 %v656, %v658
      %704 = vadd.xlane.f32.xlu0 %v703
      %v705 = vpop.xlane.xlu0 %704
      %v706 = vrot.slane %v705, 4
      %v707 = vadd.f32 %v705, %v706
      %v708 = vrot.slane %v707, 2
      %v709 = vadd.f32 %v707, %v708
      %v710 = vrot.slane %v709, 1
      %v711 = vadd.f32 %v709, %v710
      %s712 = vtos %v711
      %v713 = vstv %s712
      %v714 = vmul.f32 %v713, 0.00048828125
      %v715 = vmul.f32 %v656, %v656
      %v716 = vmul.f32 %v658, %v658
      %v717 = vadd.f32 %v715, %v716
      %718 = vadd.xlane.f32.xlu0 %v717
      %v719 = vpop.xlane.xlu0 %718
      %v720 = vrot.slane %v719, 4
      %v721 = vadd.f32 %v719, %v720
      %v722 = vrot.slane %v721, 2
      %v723 = vadd.f32 %v721, %v722
      %v724 = vrot.slane %v723, 1
      %v725 = vadd.f32 %v723, %v724
      %s726 = vtos %v725
      %v727 = vstv %s726
      %v728 = vmul.f32 %v727, 0.00048828125
      %v729 = vmul.f32 %v714, %v714
      %v730 = vsub.f32 %v728, %v729
      %v731 = vmax.f32 %v730, 0.0
      %v732 = vsub.f32 %v656, %v714
      %v733 = vsub.f32 %v658, %v714
      %v734 = vadd.f32 %v731, 1e-05
      %v735 = vrsqrt.pop %v734
      %v736 = vmul.f32 %v732, %v735
      %v737 = vmul.f32 %v733, %v735
      %v738 = vmul.f32 %v736, %v433
      %v739 = vmul.f32 %v737, %v434
      %v740 = vadd.f32 %v738, %v435
      %v741 = vadd.f32 %v739, %v436
      %v742 = vmax.f32 %v740, 0.0
      %v743 = vmax.f32 %v741, 0.0
      %744 = vrot.lane.b32.xlu0 %v742, 17
      %v745 = vpop.permute.xlu0 %744
      %746 = vrot.lane.b32.xlu0 %v743, 17
      %v747 = vpop.permute.xlu0 %746
      %v748 = vsel %vm453, %v745, %v747
      %v749 = vsel %vm453, %v747, %v745
      %v750 = vmul.f32 %v749, %v459
      %v751 = vmul.f32 %v748, %v463
      %752 = vrot.lane.b32.xlu0 %v742, 16
      %v753 = vpop.permute.xlu0 %752
      %754 = vrot.lane.b32.xlu0 %v743, 16
      %v755 = vpop.permute.xlu0 %754
      %v756 = vsel %vm470, %v753, %v755
      %v757 = vsel %vm470, %v755, %v753
      %v758 = vmul.f32 %v757, %v476
      %v759 = vmul.f32 %v756, %v480
      %760 = vrot.lane.b32.xlu0 %v742, 15
      %v761 = vpop.permute.xlu0 %760
      %762 = vrot.lane.b32.xlu0 %v743, 15
      %v763 = vpop.permute.xlu0 %762
      %v764 = vsel %vm487, %v761, %v763
      %v765 = vsel %vm487, %v763, %v761
      %v766 = vmul.f32 %v765, %v493
      %v767 = vmul.f32 %v764, %v497
      %768 = vrot.lane.b32.xlu0 %v742, 1
      %v769 = vpop.permute.xlu0 %768
      %770 = vrot.lane.b32.xlu0 %v743, 1
      %v771 = vpop.permute.xlu0 %770
      %v772 = vsel %vm504, %v769, %v771
      %v773 = vsel %vm504, %v771, %v769
      %v774 = vmul.f32 %v773, %v510
      %v775 = vmul.f32 %v772, %v514
      %776 = vrot.lane.b32.xlu0 %v742, 127
      %v777 = vpop.permute.xlu0 %776
      %778 = vrot.lane.b32.xlu0 %v743, 127
      %v779 = vpop.permute.xlu0 %778
      %v780 = vsel %vm521, %v777, %v779
      %v781 = vsel %vm521, %v779, %v777
      %v782 = vmul.f32 %v780, %v527
      %v783 = vmul.f32 %v781, %v531
      %784 = vrot.lane.b32.xlu0 %v742, 113
      %v785 = vpop.permute.xlu0 %784
      %786 = vrot.lane.b32.xlu0 %v743, 113
      %v787 = vpop.permute.xlu0 %786
      %v788 = vsel %vm538, %v785, %v787
      %v789 = vsel %vm538, %v787, %v785
      %v790 = vmul.f32 %v788, %v544
      %v791 = vmul.f32 %v789, %v548
      %792 = vrot.lane.b32.xlu0 %v742, 112
      %v793 = vpop.permute.xlu0 %792
      %794 = vrot.lane.b32.xlu0 %v743, 112
      %v795 = vpop.permute.xlu0 %794
      %v796 = vsel %vm555, %v793, %v795
      %v797 = vsel %vm555, %v795, %v793
      %v798 = vmul.f32 %v796, %v561
      %v799 = vmul.f32 %v797, %v565
      %800 = vrot.lane.b32.xlu0 %v742, 111
      %v801 = vpop.permute.xlu0 %800
      %802 = vrot.lane.b32.xlu0 %v743, 111
      %v803 = vpop.permute.xlu0 %802
      %v804 = vsel %vm572, %v801, %v803
      %v805 = vsel %vm572, %v803, %v801
      %v806 = vmul.f32 %v804, %v578
      %v807 = vmul.f32 %v805, %v582
      %v808 = vpack.c.bf16 %v758, %v750
      %v809 = vpack.c.bf16 %v759, %v751
      %v810 = vpack.c.bf16 %v774, %v766
      %v811 = vpack.c.bf16 %v775, %v767
      %v812 = vpack.c.bf16 %v782, %v742
      %v813 = vpack.c.bf16 %v783, %v743
      %v814 = vpack.c.bf16 %v798, %v790
      %v815 = vpack.c.bf16 %v799, %v791
      %v816 = vpack.c.bf16 %v806, %v806
      %v817 = vpack.c.bf16 %v807, %v807
      %819 = vset.pattern.permute.xlu0 0
      %820 = vperm.xlu0 %819, %v432
      %v821 = vpop.permute.xlu0 %820
      %v824 = vsel %vm610, %v431, 0
      %v827 = vsel %vm614, %v816, 0
      %v830 = vsel %vm614, %v817, 0
      %832 = vmatprep.subr.bf16.mxu0 %v809
      %833 = vmatpush1.bf16.msra.mxu0 %v808
      %834 = vmatprep.subr.bf16.mxu0 %v811
      %835 = vmatpush1.bf16.msra.mxu0 %v810
      %836 = vmatprep.subr.bf16.mxu0 %v813
      %837 = vmatpush1.bf16.msra.mxu0 %v812
      %838 = vmatprep.subr.bf16.mxu0 %v815
      %839 = vmatpush1.bf16.msra.mxu0 %v814
      %840 = vmatprep.subr.bf16.mxu0 %v830
      %841 = vmatpush1.bf16.msra.mxu0 %v827
      %842 = vmatprep.subr.bf16.mxu0 0
      %843 = vmatpush1.bf16.msra.mxu0 0
      %844 = vmatprep.subr.bf16.mxu0 0
      %845 = vmatpush1.bf16.msra.mxu0 0
      %846 = vmatprep.subr.bf16.mxu0 0
      %847 = vmatpush1.bf16.msra.mxu0 0
      %848 = vmatprep.subr.bf16.mxu0 0
      %849 = vmatpush1.bf16.msra.mxu0 0
      %850 = vmatprep.subr.bf16.mxu0 0
      %851 = vmatpush1.bf16.msra.mxu0 0
      %852 = vmatprep.subr.bf16.mxu0 0
      %853 = vmatpush1.bf16.msra.mxu0 0
      %854 = vmatprep.subr.bf16.mxu0 0
      %855 = vmatpush1.bf16.msra.mxu0 0
      %856 = vmatprep.subr.bf16.mxu0 0
      %857 = vmatpush1.bf16.msra.mxu0 0
      %858 = vmatprep.subr.bf16.mxu0 0
      %859 = vmatpush1.bf16.msra.mxu0 0
      %860 = vmatprep.subr.bf16.mxu0 0
      %861 = vmatpush1.bf16.msra.mxu0 0
      %862 = vmatprep.subr.bf16.mxu0 0
      %863 = vmatpush1.bf16.msra.mxu0 0
      %864 = vmatprep.mubr.bf16.mxu0 0
      %865 = vmatmul.mubr.bf16.gmra.mrb[0].mxu0 %v824
      %v866 = vpop.f32.mrb[0].mxu0
      %v867 = vadd.f32 %v821, %v866
      %v868 = vpop.f32.mrb[0].mxu0
      %v869 = vadd.f32 %v821, %v868
      %v870 = vpop.f32.mrb[0].mxu0
      %v871 = vpop.f32.mrb[0].mxu0
      %872 = vdwg.mxu0
      %v873 = vadd.f32 %v867, %v869
      %874 = vadd.xlane.f32.xlu0 %v873
      %v875 = vpop.xlane.xlu0 %874
      %v876 = vrot.slane %v875, 4
      %v877 = vadd.f32 %v875, %v876
      %v878 = vrot.slane %v877, 2
      %v879 = vadd.f32 %v877, %v878
      %v880 = vrot.slane %v879, 1
      %v881 = vadd.f32 %v879, %v880
      %s882 = vtos %v881
      %v883 = vstv %s882
      %v884 = vmul.f32 %v883, 0.00048828125
      %v885 = vmul.f32 %v867, %v867
      %v886 = vmul.f32 %v869, %v869
      %v887 = vadd.f32 %v885, %v886
      %888 = vadd.xlane.f32.xlu0 %v887
      %v889 = vpop.xlane.xlu0 %888
      %v890 = vrot.slane %v889, 4
      %v891 = vadd.f32 %v889, %v890
      %v892 = vrot.slane %v891, 2
      %v893 = vadd.f32 %v891, %v892
      %v894 = vrot.slane %v893, 1
      %v895 = vadd.f32 %v893, %v894
      %s896 = vtos %v895
      %v897 = vstv %s896
      %v898 = vmul.f32 %v897, 0.00048828125
      %v899 = vmul.f32 %v884, %v884
      %v900 = vsub.f32 %v898, %v899
      %v901 = vmax.f32 %v900, 0.0
      %v902 = vsub.f32 %v867, %v884
      %v903 = vsub.f32 %v869, %v884
      %v904 = vadd.f32 %v901, 1e-05
      %v905 = vrsqrt.pop %v904
      %v906 = vmul.f32 %v902, %v905
      %v907 = vmul.f32 %v903, %v905
      %v908 = vmul.f32 %v906, %v437
      %v909 = vmul.f32 %v907, %v438
      %v910 = vadd.f32 %v908, %v439
      %v911 = vadd.f32 %v909, %v440
      %v912 = vmax.f32 %v910, 0.0
      %v913 = vmax.f32 %v911, 0.0
      %v914 = vadd.f32 %v912, %v701
      %v915 = vadd.f32 %v913, %v702
      %916 = vst [vmem:[%s420] sm:$0xff] %v914
      %917 = vst [vmem:[%s420 + $0x8] sm:$0xff] %v915
      %s918 = scalar_lea.vmem %s413, 16
      %v919 = vld [vmem:[%s918] sm:$0xff]
      %v920 = vld [vmem:[%s918 + $0x8] sm:$0xff]
      %921 = vrot.lane.b32.xlu0 %v919, 17
      %v922 = vpop.permute.xlu0 %921
      %923 = vrot.lane.b32.xlu0 %v920, 17
      %v924 = vpop.permute.xlu0 %923
      %v925 = vsel %vm453, %v922, %v924
      %v926 = vsel %vm453, %v924, %v922
      %v927 = vmul.f32 %v926, %v459
      %v928 = vmul.f32 %v925, %v463
      %929 = vrot.lane.b32.xlu0 %v919, 16
      %v930 = vpop.permute.xlu0 %929
      %931 = vrot.lane.b32.xlu0 %v920, 16
      %v932 = vpop.permute.xlu0 %931
      %v933 = vsel %vm470, %v930, %v932
      %v934 = vsel %vm470, %v932, %v930
      %v935 = vmul.f32 %v934, %v476
      %v936 = vmul.f32 %v933, %v480
      %937 = vrot.lane.b32.xlu0 %v919, 15
      %v938 = vpop.permute.xlu0 %937
      %939 = vrot.lane.b32.xlu0 %v920, 15
      %v940 = vpop.permute.xlu0 %939
      %v941 = vsel %vm487, %v938, %v940
      %v942 = vsel %vm487, %v940, %v938
      %v943 = vmul.f32 %v942, %v493
      %v944 = vmul.f32 %v941, %v497
      %945 = vrot.lane.b32.xlu0 %v919, 1
      %v946 = vpop.permute.xlu0 %945
      %947 = vrot.lane.b32.xlu0 %v920, 1
      %v948 = vpop.permute.xlu0 %947
      %v949 = vsel %vm504, %v946, %v948
      %v950 = vsel %vm504, %v948, %v946
      %v951 = vmul.f32 %v950, %v510
      %v952 = vmul.f32 %v949, %v514
      %953 = vrot.lane.b32.xlu0 %v919, 127
      %v954 = vpop.permute.xlu0 %953
      %955 = vrot.lane.b32.xlu0 %v920, 127
      %v956 = vpop.permute.xlu0 %955
      %v957 = vsel %vm521, %v954, %v956
      %v958 = vsel %vm521, %v956, %v954
      %v959 = vmul.f32 %v957, %v527
      %v960 = vmul.f32 %v958, %v531
      %961 = vrot.lane.b32.xlu0 %v919, 113
      %v962 = vpop.permute.xlu0 %961
      %963 = vrot.lane.b32.xlu0 %v920, 113
      %v964 = vpop.permute.xlu0 %963
      %v965 = vsel %vm538, %v962, %v964
      %v966 = vsel %vm538, %v964, %v962
      %v967 = vmul.f32 %v965, %v544
      %v968 = vmul.f32 %v966, %v548
      %969 = vrot.lane.b32.xlu0 %v919, 112
      %v970 = vpop.permute.xlu0 %969
      %971 = vrot.lane.b32.xlu0 %v920, 112
      %v972 = vpop.permute.xlu0 %971
      %v973 = vsel %vm555, %v970, %v972
      %v974 = vsel %vm555, %v972, %v970
      %v975 = vmul.f32 %v973, %v561
      %v976 = vmul.f32 %v974, %v565
      %977 = vrot.lane.b32.xlu0 %v919, 111
      %v978 = vpop.permute.xlu0 %977
      %979 = vrot.lane.b32.xlu0 %v920, 111
      %v980 = vpop.permute.xlu0 %979
      %v981 = vsel %vm572, %v978, %v980
      %v982 = vsel %vm572, %v980, %v978
      %v983 = vmul.f32 %v981, %v578
      %v984 = vmul.f32 %v982, %v582
      %v985 = vpack.c.bf16 %v935, %v927
      %v986 = vpack.c.bf16 %v936, %v928
      %v987 = vpack.c.bf16 %v951, %v943
      %v988 = vpack.c.bf16 %v952, %v944
      %v989 = vpack.c.bf16 %v959, %v919
      %v990 = vpack.c.bf16 %v960, %v920
      %v991 = vpack.c.bf16 %v975, %v967
      %v992 = vpack.c.bf16 %v976, %v968
      %v993 = vpack.c.bf16 %v983, %v983
      %v994 = vpack.c.bf16 %v984, %v984
      %v996 = vsel %vm614, %v993, 0
      %v999 = vsel %vm614, %v994, 0
      %1001 = vmatprep.subr.bf16.mxu0 %v986
      %1002 = vmatpush1.bf16.msra.mxu0 %v985
      %1003 = vmatprep.subr.bf16.mxu0 %v988
      %1004 = vmatpush1.bf16.msra.mxu0 %v987
      %1005 = vmatprep.subr.bf16.mxu0 %v990
      %1006 = vmatpush1.bf16.msra.mxu0 %v989
      %1007 = vmatprep.subr.bf16.mxu0 %v992
      %1008 = vmatpush1.bf16.msra.mxu0 %v991
      %1009 = vmatprep.subr.bf16.mxu0 %v999
      %1010 = vmatpush1.bf16.msra.mxu0 %v996
      %1011 = vmatprep.subr.bf16.mxu0 0
      %1012 = vmatpush1.bf16.msra.mxu0 0
      %1013 = vmatprep.subr.bf16.mxu0 0
      %1014 = vmatpush1.bf16.msra.mxu0 0
      %1015 = vmatprep.subr.bf16.mxu0 0
      %1016 = vmatpush1.bf16.msra.mxu0 0
      %1017 = vmatprep.subr.bf16.mxu0 0
      %1018 = vmatpush1.bf16.msra.mxu0 0
      %1019 = vmatprep.subr.bf16.mxu0 0
      %1020 = vmatpush1.bf16.msra.mxu0 0
      %1021 = vmatprep.subr.bf16.mxu0 0
      %1022 = vmatpush1.bf16.msra.mxu0 0
      %1023 = vmatprep.subr.bf16.mxu0 0
      %1024 = vmatpush1.bf16.msra.mxu0 0
      %1025 = vmatprep.subr.bf16.mxu0 0
      %1026 = vmatpush1.bf16.msra.mxu0 0
      %1027 = vmatprep.subr.bf16.mxu0 0
      %1028 = vmatpush1.bf16.msra.mxu0 0
      %1029 = vmatprep.subr.bf16.mxu0 0
      %1030 = vmatpush1.bf16.msra.mxu0 0
      %1031 = vmatprep.subr.bf16.mxu0 0
      %1032 = vmatpush1.bf16.msra.mxu0 0
      %1033 = vmatprep.mubr.bf16.mxu0 0
      %1034 = vmatmul.mubr.bf16.gmra.mrb[0].mxu0 %v612
      %v1035 = vpop.f32.mrb[0].mxu0
      %v1036 = vadd.f32 %v598, %v1035
      %v1037 = vpop.f32.mrb[0].mxu0
      %v1038 = vadd.f32 %v598, %v1037
      %v1039 = vpop.f32.mrb[0].mxu0
      %v1040 = vadd.f32 %v603, %v1039
      %v1041 = vpop.f32.mrb[0].mxu0
      %v1042 = vadd.f32 %v603, %v1041
      %1043 = vdwg.mxu0
      %v1044 = vadd.f32 %v1040, %v1042
      %1045 = vadd.xlane.f32.xlu0 %v1044
      %v1046 = vpop.xlane.xlu0 %1045
      %v1047 = vrot.slane %v1046, 4
      %v1048 = vadd.f32 %v1046, %v1047
      %v1049 = vrot.slane %v1048, 2
      %v1050 = vadd.f32 %v1048, %v1049
      %v1051 = vrot.slane %v1050, 1
      %v1052 = vadd.f32 %v1050, %v1051
      %s1053 = vtos %v1052
      %v1054 = vstv %s1053
      %v1055 = vmul.f32 %v1054, 0.00048828125
      %v1056 = vmul.f32 %v1040, %v1040
      %v1057 = vmul.f32 %v1042, %v1042
      %v1058 = vadd.f32 %v1056, %v1057
      %1059 = vadd.xlane.f32.xlu0 %v1058
      %v1060 = vpop.xlane.xlu0 %1059
      %v1061 = vrot.slane %v1060, 4
      %v1062 = vadd.f32 %v1060, %v1061
      %v1063 = vrot.slane %v1062, 2
      %v1064 = vadd.f32 %v1062, %v1063
      %v1065 = vrot.slane %v1064, 1
      %v1066 = vadd.f32 %v1064, %v1065
      %s1067 = vtos %v1066
      %v1068 = vstv %s1067
      %v1069 = vmul.f32 %v1068, 0.00048828125
      %v1070 = vmul.f32 %v1055, %v1055
      %v1071 = vsub.f32 %v1069, %v1070
      %v1072 = vmax.f32 %v1071, 0.0
      %v1073 = vsub.f32 %v1040, %v1055
      %v1074 = vsub.f32 %v1042, %v1055
      %v1075 = vadd.f32 %v1072, 1e-05
      %v1076 = vrsqrt.pop %v1075
      %v1077 = vmul.f32 %v1073, %v1076
      %v1078 = vmul.f32 %v1074, %v1076
      %v1079 = vmul.f32 %v1077, %v441
      %v1080 = vmul.f32 %v1078, %v442
      %v1081 = vadd.f32 %v1079, %v443
      %v1082 = vadd.f32 %v1080, %v444
      %v1083 = vadd.f32 %v1036, %v1038
      %1084 = vadd.xlane.f32.xlu0 %v1083
      %v1085 = vpop.xlane.xlu0 %1084
      %v1086 = vrot.slane %v1085, 4
      %v1087 = vadd.f32 %v1085, %v1086
      %v1088 = vrot.slane %v1087, 2
      %v1089 = vadd.f32 %v1087, %v1088
      %v1090 = vrot.slane %v1089, 1
      %v1091 = vadd.f32 %v1089, %v1090
      %s1092 = vtos %v1091
      %v1093 = vstv %s1092
      %v1094 = vmul.f32 %v1093, 0.00048828125
      %v1095 = vmul.f32 %v1036, %v1036
      %v1096 = vmul.f32 %v1038, %v1038
      %v1097 = vadd.f32 %v1095, %v1096
      %1098 = vadd.xlane.f32.xlu0 %v1097
      %v1099 = vpop.xlane.xlu0 %1098
      %v1100 = vrot.slane %v1099, 4
      %v1101 = vadd.f32 %v1099, %v1100
      %v1102 = vrot.slane %v1101, 2
      %v1103 = vadd.f32 %v1101, %v1102
      %v1104 = vrot.slane %v1103, 1
      %v1105 = vadd.f32 %v1103, %v1104
      %s1106 = vtos %v1105
      %v1107 = vstv %s1106
      %v1108 = vmul.f32 %v1107, 0.00048828125
      %v1109 = vmul.f32 %v1094, %v1094
      %v1110 = vsub.f32 %v1108, %v1109
      %v1111 = vmax.f32 %v1110, 0.0
      %v1112 = vsub.f32 %v1036, %v1094
      %v1113 = vsub.f32 %v1038, %v1094
      %v1114 = vadd.f32 %v1111, 1e-05
      %v1115 = vrsqrt.pop %v1114
      %v1116 = vmul.f32 %v1112, %v1115
      %v1117 = vmul.f32 %v1113, %v1115
      %v1118 = vmul.f32 %v1116, %v433
      %v1119 = vmul.f32 %v1117, %v434
      %v1120 = vadd.f32 %v1118, %v435
      %v1121 = vadd.f32 %v1119, %v436
      %v1122 = vmax.f32 %v1120, 0.0
      %v1123 = vmax.f32 %v1121, 0.0
      %1124 = vrot.lane.b32.xlu0 %v1122, 17
      %v1125 = vpop.permute.xlu0 %1124
      %1126 = vrot.lane.b32.xlu0 %v1123, 17
      %v1127 = vpop.permute.xlu0 %1126
      %v1128 = vsel %vm453, %v1125, %v1127
      %v1129 = vsel %vm453, %v1127, %v1125
      %v1130 = vmul.f32 %v1129, %v459
      %v1131 = vmul.f32 %v1128, %v463
      %1132 = vrot.lane.b32.xlu0 %v1122, 16
      %v1133 = vpop.permute.xlu0 %1132
      %1134 = vrot.lane.b32.xlu0 %v1123, 16
      %v1135 = vpop.permute.xlu0 %1134
      %v1136 = vsel %vm470, %v1133, %v1135
      %v1137 = vsel %vm470, %v1135, %v1133
      %v1138 = vmul.f32 %v1137, %v476
      %v1139 = vmul.f32 %v1136, %v480
      %1140 = vrot.lane.b32.xlu0 %v1122, 15
      %v1141 = vpop.permute.xlu0 %1140
      %1142 = vrot.lane.b32.xlu0 %v1123, 15
      %v1143 = vpop.permute.xlu0 %1142
      %v1144 = vsel %vm487, %v1141, %v1143
      %v1145 = vsel %vm487, %v1143, %v1141
      %v1146 = vmul.f32 %v1145, %v493
      %v1147 = vmul.f32 %v1144, %v497
      %1148 = vrot.lane.b32.xlu0 %v1122, 1
      %v1149 = vpop.permute.xlu0 %1148
      %1150 = vrot.lane.b32.xlu0 %v1123, 1
      %v1151 = vpop.permute.xlu0 %1150
      %v1152 = vsel %vm504, %v1149, %v1151
      %v1153 = vsel %vm504, %v1151, %v1149
      %v1154 = vmul.f32 %v1153, %v510
      %v1155 = vmul.f32 %v1152, %v514
      %1156 = vrot.lane.b32.xlu0 %v1122, 127
      %v1157 = vpop.permute.xlu0 %1156
      %1158 = vrot.lane.b32.xlu0 %v1123, 127
      %v1159 = vpop.permute.xlu0 %1158
      %v1160 = vsel %vm521, %v1157, %v1159
      %v1161 = vsel %vm521, %v1159, %v1157
      %v1162 = vmul.f32 %v1160, %v527
      %v1163 = vmul.f32 %v1161, %v531
      %1164 = vrot.lane.b32.xlu0 %v1122, 113
      %v1165 = vpop.permute.xlu0 %1164
      %1166 = vrot.lane.b32.xlu0 %v1123, 113
      %v1167 = vpop.permute.xlu0 %1166
      %v1168 = vsel %vm538, %v1165, %v1167
      %v1169 = vsel %vm538, %v1167, %v1165
      %v1170 = vmul.f32 %v1168, %v544
      %v1171 = vmul.f32 %v1169, %v548
      %1172 = vrot.lane.b32.xlu0 %v1122, 112
      %v1173 = vpop.permute.xlu0 %1172
      %1174 = vrot.lane.b32.xlu0 %v1123, 112
      %v1175 = vpop.permute.xlu0 %1174
      %v1176 = vsel %vm555, %v1173, %v1175
      %v1177 = vsel %vm555, %v1175, %v1173
      %v1178 = vmul.f32 %v1176, %v561
      %v1179 = vmul.f32 %v1177, %v565
      %1180 = vrot.lane.b32.xlu0 %v1122, 111
      %v1181 = vpop.permute.xlu0 %1180
      %1182 = vrot.lane.b32.xlu0 %v1123, 111
      %v1183 = vpop.permute.xlu0 %1182
      %v1184 = vsel %vm572, %v1181, %v1183
      %v1185 = vsel %vm572, %v1183, %v1181
      %v1186 = vmul.f32 %v1184, %v578
      %v1187 = vmul.f32 %v1185, %v582
      %v1188 = vpack.c.bf16 %v1138, %v1130
      %v1189 = vpack.c.bf16 %v1139, %v1131
      %v1190 = vpack.c.bf16 %v1154, %v1146
      %v1191 = vpack.c.bf16 %v1155, %v1147
      %v1192 = vpack.c.bf16 %v1162, %v1122
      %v1193 = vpack.c.bf16 %v1163, %v1123
      %v1194 = vpack.c.bf16 %v1178, %v1170
      %v1195 = vpack.c.bf16 %v1179, %v1171
      %v1196 = vpack.c.bf16 %v1186, %v1186
      %v1197 = vpack.c.bf16 %v1187, %v1187
      %v1199 = vsel %vm614, %v1196, 0
      %v1202 = vsel %vm614, %v1197, 0
      %1204 = vmatprep.subr.bf16.mxu0 %v1189
      %1205 = vmatpush1.bf16.msra.mxu0 %v1188
      %1206 = vmatprep.subr.bf16.mxu0 %v1191
      %1207 = vmatpush1.bf16.msra.mxu0 %v1190
      %1208 = vmatprep.subr.bf16.mxu0 %v1193
      %1209 = vmatpush1.bf16.msra.mxu0 %v1192
      %1210 = vmatprep.subr.bf16.mxu0 %v1195
      %1211 = vmatpush1.bf16.msra.mxu0 %v1194
      %1212 = vmatprep.subr.bf16.mxu0 %v1202
      %1213 = vmatpush1.bf16.msra.mxu0 %v1199
      %1214 = vmatprep.subr.bf16.mxu0 0
      %1215 = vmatpush1.bf16.msra.mxu0 0
      %1216 = vmatprep.subr.bf16.mxu0 0
      %1217 = vmatpush1.bf16.msra.mxu0 0
      %1218 = vmatprep.subr.bf16.mxu0 0
      %1219 = vmatpush1.bf16.msra.mxu0 0
      %1220 = vmatprep.subr.bf16.mxu0 0
      %1221 = vmatpush1.bf16.msra.mxu0 0
      %1222 = vmatprep.subr.bf16.mxu0 0
      %1223 = vmatpush1.bf16.msra.mxu0 0
      %1224 = vmatprep.subr.bf16.mxu0 0
      %1225 = vmatpush1.bf16.msra.mxu0 0
      %1226 = vmatprep.subr.bf16.mxu0 0
      %1227 = vmatpush1.bf16.msra.mxu0 0
      %1228 = vmatprep.subr.bf16.mxu0 0
      %1229 = vmatpush1.bf16.msra.mxu0 0
      %1230 = vmatprep.subr.bf16.mxu0 0
      %1231 = vmatpush1.bf16.msra.mxu0 0
      %1232 = vmatprep.subr.bf16.mxu0 0
      %1233 = vmatpush1.bf16.msra.mxu0 0
      %1234 = vmatprep.subr.bf16.mxu0 0
      %1235 = vmatpush1.bf16.msra.mxu0 0
      %1236 = vmatprep.mubr.bf16.mxu0 0
      %1237 = vmatmul.mubr.bf16.gmra.mrb[0].mxu0 %v824
      %v1238 = vpop.f32.mrb[0].mxu0
      %v1239 = vadd.f32 %v821, %v1238
      %v1240 = vpop.f32.mrb[0].mxu0
      %v1241 = vadd.f32 %v821, %v1240
      %v1242 = vpop.f32.mrb[0].mxu0
      %v1243 = vpop.f32.mrb[0].mxu0
      %1244 = vdwg.mxu0
      %v1245 = vadd.f32 %v1239, %v1241
      %1246 = vadd.xlane.f32.xlu0 %v1245
      %v1247 = vpop.xlane.xlu0 %1246
      %v1248 = vrot.slane %v1247, 4
      %v1249 = vadd.f32 %v1247, %v1248
      %v1250 = vrot.slane %v1249, 2
      %v1251 = vadd.f32 %v1249, %v1250
      %v1252 = vrot.slane %v1251, 1
      %v1253 = vadd.f32 %v1251, %v1252
      %s1254 = vtos %v1253
      %v1255 = vstv %s1254
      %v1256 = vmul.f32 %v1255, 0.00048828125
      %v1257 = vmul.f32 %v1239, %v1239
      %v1258 = vmul.f32 %v1241, %v1241
      %v1259 = vadd.f32 %v1257, %v1258
      %1260 = vadd.xlane.f32.xlu0 %v1259
      %v1261 = vpop.xlane.xlu0 %1260
      %v1262 = vrot.slane %v1261, 4
      %v1263 = vadd.f32 %v1261, %v1262
      %v1264 = vrot.slane %v1263, 2
      %v1265 = vadd.f32 %v1263, %v1264
      %v1266 = vrot.slane %v1265, 1
      %v1267 = vadd.f32 %v1265, %v1266
      %s1268 = vtos %v1267
      %v1269 = vstv %s1268
      %v1270 = vmul.f32 %v1269, 0.00048828125
      %v1271 = vmul.f32 %v1256, %v1256
      %v1272 = vsub.f32 %v1270, %v1271
      %v1273 = vmax.f32 %v1272, 0.0
      %v1274 = vsub.f32 %v1239, %v1256
      %v1275 = vsub.f32 %v1241, %v1256
      %v1276 = vadd.f32 %v1273, 1e-05
      %v1277 = vrsqrt.pop %v1276
      %v1278 = vmul.f32 %v1274, %v1277
      %v1279 = vmul.f32 %v1275, %v1277
      %v1280 = vmul.f32 %v1278, %v437
      %v1281 = vmul.f32 %v1279, %v438
      %v1282 = vadd.f32 %v1280, %v439
      %v1283 = vadd.f32 %v1281, %v440
      %v1284 = vmax.f32 %v1282, 0.0
      %v1285 = vmax.f32 %v1283, 0.0
      %v1286 = vadd.f32 %v1284, %v1081
      %v1287 = vadd.f32 %v1285, %v1082
      %s1288 = scalar_lea.vmem %s420, 16
      %1289 = vst [vmem:[%s1288] sm:$0xff] %v1286
      %1290 = vst [vmem:[%s1288 + $0x8] sm:$0xff] %v1287
      %s1291 = smul.u32 2, %s23
      %p1292 = scmp.lt.s32.totalorder %s1291, 3
      %s1293 = scalar_select %p1292, %s1291, 3
      %s1294 = smul.addr %s1293, 2
      %s1295 = smul.addr %s1294, 8
      %s1296 = scalar_lea.vmem %s12, %s1295
      // Predicated region
      $region69: #{_forward.1} parent=67 // pred_check
        %p1297 = pneg %p298
      $region70: #{_forward.1} parent=67 // pred_check_branch
        %1299 = sbr.rel (%p1297) target = $region72
      $region71: #{_forward.1} parent=67 // pred_region
        %s1300 = smul.u32 2, %s23
      $region72: #{_forward.1} parent=67 // pred_fallthru
        _
    $region68: #{_forward.1} parent=5 // pred_fallthru
      _
    %p1301 = scmp.le.s32.totalorder 2, %s18
    // Predicated region
    $region73: #{_forward.1} parent=5 // pred_check
      %p1302 = pneg %p1301
    $region74: #{_forward.1} parent=5 // pred_check_branch
      %1304 = sbr.rel (%p1302) target = $region76
    $region75: #{_forward.1} parent=5 // pred_region
      %s1305 = ssub.s32 %s18, 2
      // Predicated region
      $region77: #{_forward.1} parent=75 // pred_check
        %p1306 = pneg %p304
      $region78: #{_forward.1} parent=75 // pred_check_branch
        %1308 = sbr.rel (%p1306) target = $region80
      $region79: #{_forward.1} parent=75 // pred_region
        %s1309 = smul.u32 2, %s24
        %p1310 = scmp.lt.s32.totalorder %s1309, 3
        %s1311 = scalar_select %p1310, %s1309, 3
        %s1312 = smul.addr %s1311, 2
        %s1313 = smul.addr %s1312, 8
        %s1314 = scalar_lea.vmem %s12, %s1313
      $region80: #{_forward.1} parent=75 // pred_fallthru
        _
    $region76: #{_forward.1} parent=5 // pred_fallthru
      _
  $region6: #{_forward.1} parent=0 // loop_footer
    %s22 = sadd.s32 1, %s18
  $region7: #{_forward.1} parent=0 // loop_footer_branch
    %17 = sbr.rel target = $region3
  $region8: #{_forward.1} parent=0 // loop_exit
    _

</llo_original>
